<compile_context>
chip_gen: v5e
topology: v5e:2x2
jax: 0.10.0
libtpu: 0.0.40
codegen_flags: <defaults>
</compile_context>

<pallas_src>
import functools

import jax
import jax.numpy as jnp
from jax.experimental import pallas as pl
from jax.experimental.pallas import tpu as pltpu
from jax.scipy.linalg import block_diag

LN_EPS = 1e-5
BN_EPS = 1e-5


def _round_up(x, m):
    return ((x + m - 1) // m) * m


# ------------------------------ fused kernel --------------------------------
def _build_fused_kernel(*, domain_num, task_num, expert_num, n_layers,
                        layer_dims, fl):
    n_exp = expert_num + domain_num + task_num
    T = domain_num * task_num
    D = domain_num

    def kernel(*refs):
        it = iter(refs)
        x_ref = next(it)           # (TM, d0)   input embeddings tile
        oh_ref = next(it)          # (TM, D)    domain one-hot tile (f32)
        skip_w = next(it)          # (d0, d2)
        skip_b = next(it)          # (1, d2)
        skip_g = next(it)
        skip_be = next(it)
        star_w = next(it)          # (d0, D*d1)   packed slot_w[d]*shared_w
        star_b = next(it)          # (D, d1)      slot_b + shared_b
        smlp_w = next(it)          # (d1, d2)
        smlp_b = next(it)
        smlp_g = next(it)
        smlp_be = next(it)
        exp_p = [(next(it), next(it), next(it), next(it)) for _ in range(n_layers)]
        gate_w = next(it)          # (d2, E)   only gate[task_num-1] (torch quirk)
        gate_b = next(it)          # (1, E)
        tw_sh = next(it)           # (fl, T*fl)      BN-folded shared slab
        tw_dom = next(it)          # (D*fl, T*fl)    block-sparse domain slab
        tw_task = next(it)         # (S*fl, T*fl)    block-sparse task slab
        tb1 = next(it)             # (1, T*fl)       BN-folded bias
        tw2 = next(it)             # (T*fl, T)       block-diag second layer
        tb2 = next(it)             # (1, T)
        o_ref = next(it)           # (TM, task_num)

        x = x_ref[...]
        onehot = oh_ref[...]
        B = x.shape[0]

        def ln_relu(y, g, be):
            # single-pass LayerNorm: two independent cross-lane reductions
            n = y.shape[-1]
            s1 = jnp.sum(y, axis=-1, keepdims=True)
            s2 = jnp.sum(y * y, axis=-1, keepdims=True)
            mu = s1 * (1.0 / n)
            var = s2 * (1.0 / n) - mu * mu
            yn = (y - mu) * jax.lax.rsqrt(var + LN_EPS)
            return jnp.maximum(yn * g + be, 0.0)

        def lin_ln_relu(h, w, b, g, be):
            y = jnp.dot(h, w, preferred_element_type=jnp.float32) + b
            return ln_relu(y, g, be)

        # ---- skip_conn = MLP_N([d0, d2]) ----
        skip = lin_ln_relu(x, skip_w[...], skip_b[...], skip_g[...], skip_be[...])

        # ---- STAR: one packed matmul over all domains + one-hot select ----
        sb = star_b[...]
        d1 = sb.shape[1]
        star_all = jnp.dot(x, star_w[...], preferred_element_type=jnp.float32)
        emb = jnp.zeros((B, d1), jnp.float32)
        for d in range(D):
            out_d = star_all[:, d * d1:(d + 1) * d1] + sb[d:d + 1]
            emb = emb + onehot[:, d:d + 1] * out_d

        # ---- star_mlp = MLP_N([d1, d2]) + skip residual ----
        emb = lin_ln_relu(emb, smlp_w[...], smlp_b[...], smlp_g[...], smlp_be[...]) + skip

        # ---- MI experts (shared | domain | task), eval-mode mean branch ----
        # Layer 0: all experts consume the same emb -> packed (d, n_exp*f) weight.
        # Layers >=1: block-diagonal weight on the packed activation slab.
        packed = emb
        for l, (w_l, b_l, g_l, be_l) in enumerate(exp_p):
            fout = layer_dims[l + 1]
            y = jnp.dot(packed, w_l[...], preferred_element_type=jnp.float32) + b_l[...]
            parts = []
            for e in range(n_exp):
                ye = y[:, e * fout:(e + 1) * fout]
                s1 = jnp.sum(ye, axis=-1, keepdims=True)
                s2 = jnp.sum(ye * ye, axis=-1, keepdims=True)
                mu = s1 * (1.0 / fout)
                var = s2 * (1.0 / fout) - mu * mu
                parts.append((ye - mu) * jax.lax.rsqrt(var + LN_EPS))
            yn = jnp.concatenate(parts, axis=-1)
            packed = jnp.maximum(yn * g_l[...] + be_l[...], 0.0)   # (B, n_exp*fout)

        # ---- gate (only gate[task_num-1] is consumed), exact softmax ----
        logits = jnp.dot(emb, gate_w[...], preferred_element_type=jnp.float32) + gate_b[...]
        m = jnp.max(logits, axis=-1, keepdims=True)
        p = jnp.exp(logits - m)
        gate = p / jnp.sum(p, axis=-1, keepdims=True)
        shared_fea = jnp.zeros((B, fl), jnp.float32)
        for k in range(expert_num):
            shared_fea = shared_fea + gate[:, k:k + 1] * packed[:, k * fl:(k + 1) * fl]

        dom_slice = packed[:, expert_num * fl:(expert_num + D) * fl]          # (B, D*fl)
        task_slice = packed[:, (expert_num + D) * fl:(expert_num + D + task_num) * fl]

        # ---- towers: 3 grouped matmuls + block-diag second layer + 1 sigmoid ----
        h = (jnp.dot(shared_fea, tw_sh[...], preferred_element_type=jnp.float32)
             + jnp.dot(dom_slice, tw_dom[...], preferred_element_type=jnp.float32)
             + jnp.dot(task_slice, tw_task[...], preferred_element_type=jnp.float32)
             + tb1[...])
        h = jnp.maximum(h, 0.0)                                               # (B, T*fl)
        tlogits = jnp.dot(h, tw2[...], preferred_element_type=jnp.float32) + tb2[...]
        probs = jax.nn.sigmoid(tlogits)                                       # (B, T)

        # ---- per-(task, domain) routing: column t*D+d selected by onehot[:, d] ----
        oh_rep = jnp.concatenate([onehot] * task_num, axis=-1)                # (B, T)
        routed = probs * oh_rep
        cols = [jnp.sum(routed[:, tt * D:(tt + 1) * D], axis=-1, keepdims=True)
                for tt in range(task_num)]
        o_ref[...] = jnp.concatenate(cols, axis=-1)                           # (B, task_num)

    return kernel


# ------------------------- parameter construction ---------------------------
def glorot(key, shape):
    fan_in, fan_out = shape[-2], shape[-1]
    limit = (6.0 / (fan_in + fan_out)) ** 0.5
    return jax.random.uniform(key, shape, jnp.float32, -limit, limit)


def init_params(key, *, embed_dims, vocab_sizes, fcn_dims, domain_num,
                task_num, expert_num):
    input_dim = sum(embed_dims)
    full = [input_dim] + list(fcn_dims)
    assert len(full) > 3
    star_dim, post = full[:3], full[3:]
    assert star_dim[2] == post[0], "star output dim must equal expert input dim"
    n_exp = expert_num + domain_num + task_num
    T = domain_num * task_num
    fl = post[-1]
    keys = iter(jax.random.split(key, 512))
    p = {}

    p["emb_tables"] = [glorot(next(keys), (v, d))
                       for v, d in zip(vocab_sizes, embed_dims)]

    # skip_conn = MLP_N([input_dim, star_dim[2]])
    p["skip_w"] = glorot(next(keys), (star_dim[0], star_dim[2]))
    p["skip_b"] = jnp.zeros((1, star_dim[2]))
    p["skip_g"] = jnp.ones((1, star_dim[2]))
    p["skip_beta"] = jnp.zeros((1, star_dim[2]))

    # STAR: precompute per-domain effective weights (inference), packed side-by-side
    shared_w = glorot(next(keys), (star_dim[0], star_dim[1]))
    shared_b = jnp.zeros((star_dim[1],))
    slot_w = jnp.stack([glorot(next(keys), (star_dim[0], star_dim[1]))
                        for _ in range(domain_num)])
    slot_b = jnp.zeros((domain_num, star_dim[1]))
    p["star_eff_w"] = jnp.concatenate(
        [slot_w[d] * shared_w for d in range(domain_num)], axis=1)   # (d0, D*d1)
    p["star_eff_b"] = slot_b + shared_b[None, :]                     # (D, d1)

    # star_mlp = MLP_N([star_dim[1], star_dim[2]])
    p["star_w"] = glorot(next(keys), (star_dim[1], star_dim[2]))
    p["star_b"] = jnp.zeros((1, star_dim[2]))
    p["star_g"] = jnp.ones((1, star_dim[2]))
    p["star_beta"] = jnp.zeros((1, star_dim[2]))

    # Experts (mean branch only -- eval-mode output of MI_Expert), packed weights:
    #   layer 0: concat along out-dim (all experts share the same input)
    #   layer >=1: block-diagonal on the packed activation slab
    p["expert_w_packed"], p["expert_b_packed"] = [], []
    p["expert_g_packed"], p["expert_beta_packed"] = [], []
    for l in range(len(post) - 1):
        fin, fout = post[l], post[l + 1]
        w_e = [glorot(next(keys), (fin, fout)) for _ in range(n_exp)]
        wp = jnp.concatenate(w_e, axis=1) if l == 0 else block_diag(*w_e)
        p["expert_w_packed"].append(wp)
        p["expert_b_packed"].append(jnp.zeros((1, n_exp * fout)))
        p["expert_g_packed"].append(jnp.ones((1, n_exp * fout)))
        p["expert_beta_packed"].append(jnp.zeros((1, n_exp * fout)))

    # Gates (all of them, mirroring torch; only task_num-1 is used)
    p["gate_w"] = jnp.stack([glorot(next(keys), (post[0], expert_num))
                             for _ in range(T)])
    p["gate_b"] = jnp.zeros((T, expert_num))

    # Towers: fold eval BatchNorm into W1/b1, group first-layer slabs, block-diag w2
    w1 = [glorot(next(keys), (3 * fl, fl)) for _ in range(T)]
    b1 = [jnp.zeros((fl,)) for _ in range(T)]
    bn_g = [jnp.ones((fl,)) for _ in range(T)]
    bn_b = [jnp.zeros((fl,)) for _ in range(T)]
    bn_m = [jnp.zeros((fl,)) for _ in range(T)]     # running_mean
    bn_v = [jnp.ones((fl,)) for _ in range(T)]      # running_var
    w2 = [glorot(next(keys), (fl, 1)).reshape(fl) for _ in range(T)]
    b2 = [jnp.zeros(()) for _ in range(T)]

    w1f, b1f = [], []
    for t in range(T):
        scale = bn_g[t] / jnp.sqrt(bn_v[t] + BN_EPS)
        w1f.append(w1[t] * scale[None, :])
        b1f.append((b1[t] - bn_m[t]) * scale + bn_b[t])

    p["tower_w_shared"] = jnp.concatenate([w1f[t][0:fl, :] for t in range(T)], axis=1)
    wdom = jnp.zeros((domain_num * fl, T * fl))
    wtask = jnp.zeros((task_num * fl, T * fl))
    for t in range(T):
        d = t % domain_num
        s = t % task_num
        wdom = wdom.at[d * fl:(d + 1) * fl, t * fl:(t + 1) * fl].set(w1f[t][fl:2 * fl, :])
        wtask = wtask.at[s * fl:(s + 1) * fl, t * fl:(t + 1) * fl].set(w1f[t][2 * fl:3 * fl, :])
    p["tower_w_dom"] = wdom
    p["tower_w_task"] = wtask
    p["tower_b1_packed"] = jnp.concatenate(b1f, axis=0).reshape(1, T * fl)
    w2bd = jnp.zeros((T * fl, T))
    for t in range(T):
        w2bd = w2bd.at[t * fl:(t + 1) * fl, t].set(w2[t])
    p["tower_w2_bd"] = w2bd
    p["tower_b2_packed"] = jnp.stack(b2).reshape(1, T)
    return p


# --------------------------------- forward ----------------------------------
@functools.partial(jax.jit,
                   static_argnames=("domain_num", "task_num", "expert_num", "block_rows"))
def forward(params, x, *, domain_num, task_num, expert_num, block_rows=512):
    num_features = len(params["emb_tables"])
    domain_id = x[-1, :]
    onehot = (domain_id[:, None] == jnp.arange(domain_num)[None, :]).astype(jnp.float32)

    # EmbeddingLayer(x, features, squeeze_dim=True): per-field lookup + concat (XLA glue)
    input_emb = jnp.concatenate(
        [params["emb_tables"][f][x[f]] for f in range(num_features)], axis=-1)
    B, d0 = input_emb.shape

    n_exp = expert_num + domain_num + task_num
    n_layers = len(params["expert_w_packed"])
    layer_dims = [params["expert_w_packed"][0].shape[0]]
    for l in range(n_layers):
        layer_dims.append(params["expert_w_packed"][l].shape[1] // n_exp)
    fl = layer_dims[-1]
    gidx = task_num - 1   # torch leftover-loop-variable quirk

    # batch grid: biggest tile that divides the (padded) batch, multiple of 8
    TM = min(block_rows, _round_up(B, 8))
    Bp = _round_up(B, TM)
    if Bp != B:
        input_emb = jnp.pad(input_emb, ((0, Bp - B), (0, 0)))
        onehot = jnp.pad(onehot, ((0, Bp - B), (0, 0)))

    kernel = _build_fused_kernel(domain_num=domain_num, task_num=task_num,
                                 expert_num=expert_num, n_layers=n_layers,
                                 layer_dims=tuple(layer_dims), fl=fl)

    weight_args = [
        params["skip_w"], params["skip_b"], params["skip_g"], params["skip_beta"],
        params["star_eff_w"], params["star_eff_b"],
        params["star_w"], params["star_b"], params["star_g"], params["star_beta"],
    ]
    for l in range(n_layers):
        weight_args += [params["expert_w_packed"][l], params["expert_b_packed"][l],
                        params["expert_g_packed"][l], params["expert_beta_packed"][l]]
    weight_args += [params["gate_w"][gidx], params["gate_b"][gidx].reshape(1, -1),
                    params["tower_w_shared"], params["tower_w_dom"],
                    params["tower_w_task"], params["tower_b1_packed"],
                    params["tower_w2_bd"], params["tower_b2_packed"]]

    def _tile_spec(feat):
        return pl.BlockSpec((TM, feat), lambda i: (i, 0))

    def _const_spec(arr):
        nd = arr.ndim
        return pl.BlockSpec(arr.shape, lambda i, _nd=nd: (0,) * _nd)

    in_specs = [_tile_spec(d0), _tile_spec(domain_num)] + [_const_spec(a) for a in weight_args]
    out_specs = pl.BlockSpec((TM, task_num), lambda i: (i, 0))

    out = pl.pallas_call(
        kernel,
        out_shape=jax.ShapeDtypeStruct((Bp, task_num), jnp.float32),
        grid_spec=pltpu.PrefetchScalarGridSpec(
            num_scalar_prefetch=0,
            grid=(Bp // TM,),
            in_specs=in_specs,
            out_specs=out_specs,
        ),
        compiler_params=pltpu.CompilerParams(dimension_semantics=("parallel",)),
    )(input_emb, onehot, *weight_args)
    return out[:B]


# ----------------------------------- main ------------------------------------
if __name__ == "__main__":
    key = jax.random.PRNGKey(0)
    embed_dims = [8, 8, 8, 8]          # 4 features, input_dim = 32
    vocab_sizes = [16, 16, 16, 16]
    fcn_dims = [64, 32, 32, 32, 16]    # full fcn_dim = [32,64,32 | 32,32,16]
    domain_num, task_num, expert_num = 3, 2, 4
    B = 8

    pkey, xkey, dkey = jax.random.split(key, 3)
    params = init_params(pkey, embed_dims=embed_dims, vocab_sizes=vocab_sizes,
                         fcn_dims=fcn_dims, domain_num=domain_num,
                         task_num=task_num, expert_num=expert_num)

    feat_ids = jax.random.randint(xkey, (len(embed_dims), B), 0, 16)
    dom = jax.random.randint(dkey, (1, B), 0, domain_num)
    x = jnp.concatenate([feat_ids, dom], axis=0).astype(jnp.int32)   # (5, 8)

    out = forward(params, x, domain_num=domain_num, task_num=task_num,
                  expert_num=expert_num)
    out = jax.block_until_ready(out)
    assert out.shape == (B, task_num), out.shape
    assert bool(jnp.all(jnp.isfinite(out)))
    assert bool(jnp.all((out >= 0.0) & (out <= 1.0)))
    print("KERNEL_OK")
</pallas_src>

<mosaic_0001>
module attributes {stable_mosaic.version = 11 : i64} {
  func.func @kernel(%arg0: i32, %arg1: memref<8x32xf32, #tpu.memory_space<vmem>>, %arg2: memref<8x3xf32, #tpu.memory_space<vmem>>, %arg3: memref<32x32xf32, #tpu.memory_space<vmem>>, %arg4: memref<1x32xf32, #tpu.memory_space<vmem>>, %arg5: memref<1x32xf32, #tpu.memory_space<vmem>>, %arg6: memref<1x32xf32, #tpu.memory_space<vmem>>, %arg7: memref<32x192xf32, #tpu.memory_space<vmem>>, %arg8: memref<3x64xf32, #tpu.memory_space<vmem>>, %arg9: memref<64x32xf32, #tpu.memory_space<vmem>>, %arg10: memref<1x32xf32, #tpu.memory_space<vmem>>, %arg11: memref<1x32xf32, #tpu.memory_space<vmem>>, %arg12: memref<1x32xf32, #tpu.memory_space<vmem>>, %arg13: memref<32x288xf32, #tpu.memory_space<vmem>>, %arg14: memref<1x288xf32, #tpu.memory_space<vmem>>, %arg15: memref<1x288xf32, #tpu.memory_space<vmem>>, %arg16: memref<1x288xf32, #tpu.memory_space<vmem>>, %arg17: memref<288x144xf32, #tpu.memory_space<vmem>>, %arg18: memref<1x144xf32, #tpu.memory_space<vmem>>, %arg19: memref<1x144xf32, #tpu.memory_space<vmem>>, %arg20: memref<1x144xf32, #tpu.memory_space<vmem>>, %arg21: memref<32x4xf32, #tpu.memory_space<vmem>>, %arg22: memref<1x4xf32, #tpu.memory_space<vmem>>, %arg23: memref<16x96xf32, #tpu.memory_space<vmem>>, %arg24: memref<48x96xf32, #tpu.memory_space<vmem>>, %arg25: memref<32x96xf32, #tpu.memory_space<vmem>>, %arg26: memref<1x96xf32, #tpu.memory_space<vmem>>, %arg27: memref<96x6xf32, #tpu.memory_space<vmem>>, %arg28: memref<1x6xf32, #tpu.memory_space<vmem>>, %arg29: memref<8x2xf32, #tpu.memory_space<vmem>>) attributes {dimension_semantics = [#tpu.dimension_semantics<parallel>], iteration_bounds = array<i64: 1>, scalar_prefetch = 0 : i64, scratch_operands = 0 : i64, tpu.core_type = #tpu.core_type<tc>, window_params = [{transform_indices = @transform_0, window_bounds = array<i64: 8, 32>}, {transform_indices = @transform_1, window_bounds = array<i64: 8, 3>}, {pipeline_mode = #tpu.pipeline_mode<synchronous>, transform_indices = @transform_2, window_bounds = array<i64: 32, 32>}, {pipeline_mode = #tpu.pipeline_mode<synchronous>, transform_indices = @transform_3, window_bounds = array<i64: 1, 32>}, {pipeline_mode = #tpu.pipeline_mode<synchronous>, transform_indices = @transform_4, window_bounds = array<i64: 1, 32>}, {pipeline_mode = #tpu.pipeline_mode<synchronous>, transform_indices = @transform_5, window_bounds = array<i64: 1, 32>}, {pipeline_mode = #tpu.pipeline_mode<synchronous>, transform_indices = @transform_6, window_bounds = array<i64: 32, 192>}, {pipeline_mode = #tpu.pipeline_mode<synchronous>, transform_indices = @transform_7, window_bounds = array<i64: 3, 64>}, {pipeline_mode = #tpu.pipeline_mode<synchronous>, transform_indices = @transform_8, window_bounds = array<i64: 64, 32>}, {pipeline_mode = #tpu.pipeline_mode<synchronous>, transform_indices = @transform_9, window_bounds = array<i64: 1, 32>}, {pipeline_mode = #tpu.pipeline_mode<synchronous>, transform_indices = @transform_10, window_bounds = array<i64: 1, 32>}, {pipeline_mode = #tpu.pipeline_mode<synchronous>, transform_indices = @transform_11, window_bounds = array<i64: 1, 32>}, {pipeline_mode = #tpu.pipeline_mode<synchronous>, transform_indices = @transform_12, window_bounds = array<i64: 32, 288>}, {pipeline_mode = #tpu.pipeline_mode<synchronous>, transform_indices = @transform_13, window_bounds = array<i64: 1, 288>}, {pipeline_mode = #tpu.pipeline_mode<synchronous>, transform_indices = @transform_14, window_bounds = array<i64: 1, 288>}, {pipeline_mode = #tpu.pipeline_mode<synchronous>, transform_indices = @transform_15, window_bounds = array<i64: 1, 288>}, {pipeline_mode = #tpu.pipeline_mode<synchronous>, transform_indices = @transform_16, window_bounds = array<i64: 288, 144>}, {pipeline_mode = #tpu.pipeline_mode<synchronous>, transform_indices = @transform_17, window_bounds = array<i64: 1, 144>}, {pipeline_mode = #tpu.pipeline_mode<synchronous>, transform_indices = @transform_18, window_bounds = array<i64: 1, 144>}, {pipeline_mode = #tpu.pipeline_mode<synchronous>, transform_indices = @transform_19, window_bounds = array<i64: 1, 144>}, {pipeline_mode = #tpu.pipeline_mode<synchronous>, transform_indices = @transform_20, window_bounds = array<i64: 32, 4>}, {pipeline_mode = #tpu.pipeline_mode<synchronous>, transform_indices = @transform_21, window_bounds = array<i64: 1, 4>}, {pipeline_mode = #tpu.pipeline_mode<synchronous>, transform_indices = @transform_22, window_bounds = array<i64: 16, 96>}, {pipeline_mode = #tpu.pipeline_mode<synchronous>, transform_indices = @transform_23, window_bounds = array<i64: 48, 96>}, {pipeline_mode = #tpu.pipeline_mode<synchronous>, transform_indices = @transform_24, window_bounds = array<i64: 32, 96>}, {pipeline_mode = #tpu.pipeline_mode<synchronous>, transform_indices = @transform_25, window_bounds = array<i64: 1, 96>}, {pipeline_mode = #tpu.pipeline_mode<synchronous>, transform_indices = @transform_26, window_bounds = array<i64: 96, 6>}, {pipeline_mode = #tpu.pipeline_mode<synchronous>, transform_indices = @transform_27, window_bounds = array<i64: 1, 6>}, {transform_indices = @transform_28, window_bounds = array<i64: 8, 2>}]} {
    %c0 = arith.constant 0 : index
    %c0_0 = arith.constant 0 : index
    %0 = vector.load %arg1[%c0, %c0_0] : memref<8x32xf32, #tpu.memory_space<vmem>>, vector<8x32xf32>
    %c0_1 = arith.constant 0 : index
    %c0_2 = arith.constant 0 : index
    %1 = vector.load %arg2[%c0_1, %c0_2] : memref<8x3xf32, #tpu.memory_space<vmem>>, vector<8x3xf32>
    %c0_3 = arith.constant 0 : index
    %c0_4 = arith.constant 0 : index
    %2 = vector.load %arg3[%c0_3, %c0_4] : memref<32x32xf32, #tpu.memory_space<vmem>>, vector<32x32xf32>
    %c0_5 = arith.constant 0 : index
    %c0_6 = arith.constant 0 : index
    %3 = vector.load %arg4[%c0_5, %c0_6] : memref<1x32xf32, #tpu.memory_space<vmem>>, vector<1x32xf32>
    %c0_7 = arith.constant 0 : index
    %c0_8 = arith.constant 0 : index
    %4 = vector.load %arg5[%c0_7, %c0_8] : memref<1x32xf32, #tpu.memory_space<vmem>>, vector<1x32xf32>
    %c0_9 = arith.constant 0 : index
    %c0_10 = arith.constant 0 : index
    %5 = vector.load %arg6[%c0_9, %c0_10] : memref<1x32xf32, #tpu.memory_space<vmem>>, vector<1x32xf32>
    %cst = arith.constant dense<0.000000e+00> : vector<8x32xf32>
    %6 = tpu.matmul %0, %2, %cst {dimension_numbers = #tpu.dot_dimension_numbers<[1], [0], [0], [1], [0, 0, 1, 1], [], []>} : vector<8x32xf32>, vector<32x32xf32>, vector<8x32xf32> -> vector<8x32xf32>
    %7 = vector.broadcast %3 : vector<1x32xf32> to vector<8x32xf32>
    %8 = arith.addf %6, %7 : vector<8x32xf32>
    %cst_11 = arith.constant dense<0.000000e+00> : vector<8xf32>
    %9 = vector.multi_reduction <add>, %8, %cst_11 [1] : vector<8x32xf32> to vector<8xf32>
    %10 = vector.shape_cast %9 : vector<8xf32> to vector<8x1xf32>
    %11 = arith.mulf %8, %8 : vector<8x32xf32>
    %cst_12 = arith.constant dense<0.000000e+00> : vector<8xf32>
    %12 = vector.multi_reduction <add>, %11, %cst_12 [1] : vector<8x32xf32> to vector<8xf32>
    %13 = vector.shape_cast %12 : vector<8xf32> to vector<8x1xf32>
    %cst_13 = arith.constant 3.125000e-02 : f32
    %14 = vector.broadcast %cst_13 : f32 to vector<8x1xf32>
    %15 = arith.mulf %10, %14 : vector<8x1xf32>
    %cst_14 = arith.constant 3.125000e-02 : f32
    %16 = vector.broadcast %cst_14 : f32 to vector<8x1xf32>
    %17 = arith.mulf %13, %16 : vector<8x1xf32>
    %18 = arith.mulf %15, %15 : vector<8x1xf32>
    %19 = arith.subf %17, %18 : vector<8x1xf32>
    %20 = vector.broadcast %15 : vector<8x1xf32> to vector<8x32xf32>
    %21 = arith.subf %8, %20 : vector<8x32xf32>
    %cst_15 = arith.constant 9.99999974E-6 : f32
    %22 = vector.broadcast %cst_15 : f32 to vector<8x1xf32>
    %23 = arith.addf %19, %22 : vector<8x1xf32>
    %24 = math.rsqrt %23 : vector<8x1xf32>
    %25 = vector.broadcast %24 : vector<8x1xf32> to vector<8x32xf32>
    %26 = arith.mulf %21, %25 : vector<8x32xf32>
    %27 = vector.broadcast %4 : vector<1x32xf32> to vector<8x32xf32>
    %28 = arith.mulf %26, %27 : vector<8x32xf32>
    %29 = vector.broadcast %5 : vector<1x32xf32> to vector<8x32xf32>
    %30 = arith.addf %28, %29 : vector<8x32xf32>
    %cst_16 = arith.constant 0.000000e+00 : f32
    %31 = vector.broadcast %cst_16 : f32 to vector<8x32xf32>
    %32 = arith.maximumf %30, %31 : vector<8x32xf32>
    %c0_17 = arith.constant 0 : index
    %c0_18 = arith.constant 0 : index
    %33 = vector.load %arg8[%c0_17, %c0_18] : memref<3x64xf32, #tpu.memory_space<vmem>>, vector<3x64xf32>
    %c0_19 = arith.constant 0 : index
    %c0_20 = arith.constant 0 : index
    %34 = vector.load %arg7[%c0_19, %c0_20] : memref<32x192xf32, #tpu.memory_space<vmem>>, vector<32x192xf32>
    %cst_21 = arith.constant dense<0.000000e+00> : vector<8x192xf32>
    %35 = tpu.matmul %0, %34, %cst_21 {dimension_numbers = #tpu.dot_dimension_numbers<[1], [0], [0], [1], [0, 0, 1, 1], [], []>} : vector<8x32xf32>, vector<32x192xf32>, vector<8x192xf32> -> vector<8x192xf32>
    %cst_22 = arith.constant 0.000000e+00 : f32
    %36 = vector.broadcast %cst_22 : f32 to vector<8x64xf32>
    %37 = vector.extract_strided_slice %35 {offsets = [0, 0], sizes = [8, 64], strides = [1, 1]} : vector<8x192xf32> to vector<8x64xf32>
    %38 = vector.extract_strided_slice %33 {offsets = [0, 0], sizes = [1, 64], strides = [1, 1]} : vector<3x64xf32> to vector<1x64xf32>
    %39 = vector.broadcast %38 : vector<1x64xf32> to vector<8x64xf32>
    %40 = arith.addf %37, %39 : vector<8x64xf32>
    %41 = vector.extract_strided_slice %1 {offsets = [0, 0], sizes = [8, 1], strides = [1, 1]} : vector<8x3xf32> to vector<8x1xf32>
    %42 = vector.broadcast %41 : vector<8x1xf32> to vector<8x64xf32>
    %43 = arith.mulf %42, %40 : vector<8x64xf32>
    %44 = arith.addf %36, %43 : vector<8x64xf32>
    %45 = vector.extract_strided_slice %35 {offsets = [0, 64], sizes = [8, 64], strides = [1, 1]} : vector<8x192xf32> to vector<8x64xf32>
    %46 = vector.extract_strided_slice %33 {offsets = [1, 0], sizes = [1, 64], strides = [1, 1]} : vector<3x64xf32> to vector<1x64xf32>
    %47 = vector.broadcast %46 : vector<1x64xf32> to vector<8x64xf32>
    %48 = arith.addf %45, %47 : vector<8x64xf32>
    %49 = vector.extract_strided_slice %1 {offsets = [0, 1], sizes = [8, 1], strides = [1, 1]} : vector<8x3xf32> to vector<8x1xf32>
    %50 = vector.broadcast %49 : vector<8x1xf32> to vector<8x64xf32>
    %51 = arith.mulf %50, %48 : vector<8x64xf32>
    %52 = arith.addf %44, %51 : vector<8x64xf32>
    %53 = vector.extract_strided_slice %35 {offsets = [0, 128], sizes = [8, 64], strides = [1, 1]} : vector<8x192xf32> to vector<8x64xf32>
    %54 = vector.extract_strided_slice %33 {offsets = [2, 0], sizes = [1, 64], strides = [1, 1]} : vector<3x64xf32> to vector<1x64xf32>
    %55 = vector.broadcast %54 : vector<1x64xf32> to vector<8x64xf32>
    %56 = arith.addf %53, %55 : vector<8x64xf32>
    %57 = vector.extract_strided_slice %1 {offsets = [0, 2], sizes = [8, 1], strides = [1, 1]} : vector<8x3xf32> to vector<8x1xf32>
    %58 = vector.broadcast %57 : vector<8x1xf32> to vector<8x64xf32>
    %59 = arith.mulf %58, %56 : vector<8x64xf32>
    %60 = arith.addf %52, %59 : vector<8x64xf32>
    %c0_23 = arith.constant 0 : index
    %c0_24 = arith.constant 0 : index
    %61 = vector.load %arg9[%c0_23, %c0_24] : memref<64x32xf32, #tpu.memory_space<vmem>>, vector<64x32xf32>
    %c0_25 = arith.constant 0 : index
    %c0_26 = arith.constant 0 : index
    %62 = vector.load %arg10[%c0_25, %c0_26] : memref<1x32xf32, #tpu.memory_space<vmem>>, vector<1x32xf32>
    %c0_27 = arith.constant 0 : index
    %c0_28 = arith.constant 0 : index
    %63 = vector.load %arg11[%c0_27, %c0_28] : memref<1x32xf32, #tpu.memory_space<vmem>>, vector<1x32xf32>
    %c0_29 = arith.constant 0 : index
    %c0_30 = arith.constant 0 : index
    %64 = vector.load %arg12[%c0_29, %c0_30] : memref<1x32xf32, #tpu.memory_space<vmem>>, vector<1x32xf32>
    %cst_31 = arith.constant dense<0.000000e+00> : vector<8x32xf32>
    %65 = tpu.matmul %60, %61, %cst_31 {dimension_numbers = #tpu.dot_dimension_numbers<[1], [0], [0], [1], [0, 0, 1, 1], [], []>} : vector<8x64xf32>, vector<64x32xf32>, vector<8x32xf32> -> vector<8x32xf32>
    %66 = vector.broadcast %62 : vector<1x32xf32> to vector<8x32xf32>
    %67 = arith.addf %65, %66 : vector<8x32xf32>
    %cst_32 = arith.constant dense<0.000000e+00> : vector<8xf32>
    %68 = vector.multi_reduction <add>, %67, %cst_32 [1] : vector<8x32xf32> to vector<8xf32>
    %69 = vector.shape_cast %68 : vector<8xf32> to vector<8x1xf32>
    %70 = arith.mulf %67, %67 : vector<8x32xf32>
    %cst_33 = arith.constant dense<0.000000e+00> : vector<8xf32>
    %71 = vector.multi_reduction <add>, %70, %cst_33 [1] : vector<8x32xf32> to vector<8xf32>
    %72 = vector.shape_cast %71 : vector<8xf32> to vector<8x1xf32>
    %cst_34 = arith.constant 3.125000e-02 : f32
    %73 = vector.broadcast %cst_34 : f32 to vector<8x1xf32>
    %74 = arith.mulf %69, %73 : vector<8x1xf32>
    %cst_35 = arith.constant 3.125000e-02 : f32
    %75 = vector.broadcast %cst_35 : f32 to vector<8x1xf32>
    %76 = arith.mulf %72, %75 : vector<8x1xf32>
    %77 = arith.mulf %74, %74 : vector<8x1xf32>
    %78 = arith.subf %76, %77 : vector<8x1xf32>
    %79 = vector.broadcast %74 : vector<8x1xf32> to vector<8x32xf32>
    %80 = arith.subf %67, %79 : vector<8x32xf32>
    %cst_36 = arith.constant 9.99999974E-6 : f32
    %81 = vector.broadcast %cst_36 : f32 to vector<8x1xf32>
    %82 = arith.addf %78, %81 : vector<8x1xf32>
    %83 = math.rsqrt %82 : vector<8x1xf32>
    %84 = vector.broadcast %83 : vector<8x1xf32> to vector<8x32xf32>
    %85 = arith.mulf %80, %84 : vector<8x32xf32>
    %86 = vector.broadcast %63 : vector<1x32xf32> to vector<8x32xf32>
    %87 = arith.mulf %85, %86 : vector<8x32xf32>
    %88 = vector.broadcast %64 : vector<1x32xf32> to vector<8x32xf32>
    %89 = arith.addf %87, %88 : vector<8x32xf32>
    %cst_37 = arith.constant 0.000000e+00 : f32
    %90 = vector.broadcast %cst_37 : f32 to vector<8x32xf32>
    %91 = arith.maximumf %89, %90 : vector<8x32xf32>
    %92 = arith.addf %91, %32 : vector<8x32xf32>
    %c0_38 = arith.constant 0 : index
    %c0_39 = arith.constant 0 : index
    %93 = vector.load %arg13[%c0_38, %c0_39] : memref<32x288xf32, #tpu.memory_space<vmem>>, vector<32x288xf32>
    %cst_40 = arith.constant dense<0.000000e+00> : vector<8x288xf32>
    %94 = tpu.matmul %92, %93, %cst_40 {dimension_numbers = #tpu.dot_dimension_numbers<[1], [0], [0], [1], [0, 0, 1, 1], [], []>} : vector<8x32xf32>, vector<32x288xf32>, vector<8x288xf32> -> vector<8x288xf32>
    %c0_41 = arith.constant 0 : index
    %c0_42 = arith.constant 0 : index
    %95 = vector.load %arg14[%c0_41, %c0_42] : memref<1x288xf32, #tpu.memory_space<vmem>>, vector<1x288xf32>
    %96 = vector.broadcast %95 : vector<1x288xf32> to vector<8x288xf32>
    %97 = arith.addf %94, %96 : vector<8x288xf32>
    %98 = vector.extract_strided_slice %97 {offsets = [0, 0], sizes = [8, 32], strides = [1, 1]} : vector<8x288xf32> to vector<8x32xf32>
    %cst_43 = arith.constant dense<0.000000e+00> : vector<8xf32>
    %99 = vector.multi_reduction <add>, %98, %cst_43 [1] : vector<8x32xf32> to vector<8xf32>
    %100 = vector.shape_cast %99 : vector<8xf32> to vector<8x1xf32>
    %101 = arith.mulf %98, %98 : vector<8x32xf32>
    %cst_44 = arith.constant dense<0.000000e+00> : vector<8xf32>
    %102 = vector.multi_reduction <add>, %101, %cst_44 [1] : vector<8x32xf32> to vector<8xf32>
    %103 = vector.shape_cast %102 : vector<8xf32> to vector<8x1xf32>
    %cst_45 = arith.constant 3.125000e-02 : f32
    %104 = vector.broadcast %cst_45 : f32 to vector<8x1xf32>
    %105 = arith.mulf %100, %104 : vector<8x1xf32>
    %cst_46 = arith.constant 3.125000e-02 : f32
    %106 = vector.broadcast %cst_46 : f32 to vector<8x1xf32>
    %107 = arith.mulf %103, %106 : vector<8x1xf32>
    %108 = arith.mulf %105, %105 : vector<8x1xf32>
    %109 = arith.subf %107, %108 : vector<8x1xf32>
    %110 = vector.broadcast %105 : vector<8x1xf32> to vector<8x32xf32>
    %111 = arith.subf %98, %110 : vector<8x32xf32>
    %cst_47 = arith.constant 9.99999974E-6 : f32
    %112 = vector.broadcast %cst_47 : f32 to vector<8x1xf32>
    %113 = arith.addf %109, %112 : vector<8x1xf32>
    %114 = math.rsqrt %113 : vector<8x1xf32>
    %115 = vector.broadcast %114 : vector<8x1xf32> to vector<8x32xf32>
    %116 = arith.mulf %111, %115 : vector<8x32xf32>
    %117 = vector.extract_strided_slice %97 {offsets = [0, 32], sizes = [8, 32], strides = [1, 1]} : vector<8x288xf32> to vector<8x32xf32>
    %cst_48 = arith.constant dense<0.000000e+00> : vector<8xf32>
    %118 = vector.multi_reduction <add>, %117, %cst_48 [1] : vector<8x32xf32> to vector<8xf32>
    %119 = vector.shape_cast %118 : vector<8xf32> to vector<8x1xf32>
    %120 = arith.mulf %117, %117 : vector<8x32xf32>
    %cst_49 = arith.constant dense<0.000000e+00> : vector<8xf32>
    %121 = vector.multi_reduction <add>, %120, %cst_49 [1] : vector<8x32xf32> to vector<8xf32>
    %122 = vector.shape_cast %121 : vector<8xf32> to vector<8x1xf32>
    %cst_50 = arith.constant 3.125000e-02 : f32
    %123 = vector.broadcast %cst_50 : f32 to vector<8x1xf32>
    %124 = arith.mulf %119, %123 : vector<8x1xf32>
    %cst_51 = arith.constant 3.125000e-02 : f32
    %125 = vector.broadcast %cst_51 : f32 to vector<8x1xf32>
    %126 = arith.mulf %122, %125 : vector<8x1xf32>
    %127 = arith.mulf %124, %124 : vector<8x1xf32>
    %128 = arith.subf %126, %127 : vector<8x1xf32>
    %129 = vector.broadcast %124 : vector<8x1xf32> to vector<8x32xf32>
    %130 = arith.subf %117, %129 : vector<8x32xf32>
    %cst_52 = arith.constant 9.99999974E-6 : f32
    %131 = vector.broadcast %cst_52 : f32 to vector<8x1xf32>
    %132 = arith.addf %128, %131 : vector<8x1xf32>
    %133 = math.rsqrt %132 : vector<8x1xf32>
    %134 = vector.broadcast %133 : vector<8x1xf32> to vector<8x32xf32>
    %135 = arith.mulf %130, %134 : vector<8x32xf32>
    %136 = vector.extract_strided_slice %97 {offsets = [0, 64], sizes = [8, 32], strides = [1, 1]} : vector<8x288xf32> to vector<8x32xf32>
    %cst_53 = arith.constant dense<0.000000e+00> : vector<8xf32>
    %137 = vector.multi_reduction <add>, %136, %cst_53 [1] : vector<8x32xf32> to vector<8xf32>
    %138 = vector.shape_cast %137 : vector<8xf32> to vector<8x1xf32>
    %139 = arith.mulf %136, %136 : vector<8x32xf32>
    %cst_54 = arith.constant dense<0.000000e+00> : vector<8xf32>
    %140 = vector.multi_reduction <add>, %139, %cst_54 [1] : vector<8x32xf32> to vector<8xf32>
    %141 = vector.shape_cast %140 : vector<8xf32> to vector<8x1xf32>
    %cst_55 = arith.constant 3.125000e-02 : f32
    %142 = vector.broadcast %cst_55 : f32 to vector<8x1xf32>
    %143 = arith.mulf %138, %142 : vector<8x1xf32>
    %cst_56 = arith.constant 3.125000e-02 : f32
    %144 = vector.broadcast %cst_56 : f32 to vector<8x1xf32>
    %145 = arith.mulf %141, %144 : vector<8x1xf32>
    %146 = arith.mulf %143, %143 : vector<8x1xf32>
    %147 = arith.subf %145, %146 : vector<8x1xf32>
    %148 = vector.broadcast %143 : vector<8x1xf32> to vector<8x32xf32>
    %149 = arith.subf %136, %148 : vector<8x32xf32>
    %cst_57 = arith.constant 9.99999974E-6 : f32
    %150 = vector.broadcast %cst_57 : f32 to vector<8x1xf32>
    %151 = arith.addf %147, %150 : vector<8x1xf32>
    %152 = math.rsqrt %151 : vector<8x1xf32>
    %153 = vector.broadcast %152 : vector<8x1xf32> to vector<8x32xf32>
    %154 = arith.mulf %149, %153 : vector<8x32xf32>
    %155 = vector.extract_strided_slice %97 {offsets = [0, 96], sizes = [8, 32], strides = [1, 1]} : vector<8x288xf32> to vector<8x32xf32>
    %cst_58 = arith.constant dense<0.000000e+00> : vector<8xf32>
    %156 = vector.multi_reduction <add>, %155, %cst_58 [1] : vector<8x32xf32> to vector<8xf32>
    %157 = vector.shape_cast %156 : vector<8xf32> to vector<8x1xf32>
    %158 = arith.mulf %155, %155 : vector<8x32xf32>
    %cst_59 = arith.constant dense<0.000000e+00> : vector<8xf32>
    %159 = vector.multi_reduction <add>, %158, %cst_59 [1] : vector<8x32xf32> to vector<8xf32>
    %160 = vector.shape_cast %159 : vector<8xf32> to vector<8x1xf32>
    %cst_60 = arith.constant 3.125000e-02 : f32
    %161 = vector.broadcast %cst_60 : f32 to vector<8x1xf32>
    %162 = arith.mulf %157, %161 : vector<8x1xf32>
    %cst_61 = arith.constant 3.125000e-02 : f32
    %163 = vector.broadcast %cst_61 : f32 to vector<8x1xf32>
    %164 = arith.mulf %160, %163 : vector<8x1xf32>
    %165 = arith.mulf %162, %162 : vector<8x1xf32>
    %166 = arith.subf %164, %165 : vector<8x1xf32>
    %167 = vector.broadcast %162 : vector<8x1xf32> to vector<8x32xf32>
    %168 = arith.subf %155, %167 : vector<8x32xf32>
    %cst_62 = arith.constant 9.99999974E-6 : f32
    %169 = vector.broadcast %cst_62 : f32 to vector<8x1xf32>
    %170 = arith.addf %166, %169 : vector<8x1xf32>
    %171 = math.rsqrt %170 : vector<8x1xf32>
    %172 = vector.broadcast %171 : vector<8x1xf32> to vector<8x32xf32>
    %173 = arith.mulf %168, %172 : vector<8x32xf32>
    %174 = vector.extract_strided_slice %97 {offsets = [0, 128], sizes = [8, 32], strides = [1, 1]} : vector<8x288xf32> to vector<8x32xf32>
    %cst_63 = arith.constant dense<0.000000e+00> : vector<8xf32>
    %175 = vector.multi_reduction <add>, %174, %cst_63 [1] : vector<8x32xf32> to vector<8xf32>
    %176 = vector.shape_cast %175 : vector<8xf32> to vector<8x1xf32>
    %177 = arith.mulf %174, %174 : vector<8x32xf32>
    %cst_64 = arith.constant dense<0.000000e+00> : vector<8xf32>
    %178 = vector.multi_reduction <add>, %177, %cst_64 [1] : vector<8x32xf32> to vector<8xf32>
    %179 = vector.shape_cast %178 : vector<8xf32> to vector<8x1xf32>
    %cst_65 = arith.constant 3.125000e-02 : f32
    %180 = vector.broadcast %cst_65 : f32 to vector<8x1xf32>
    %181 = arith.mulf %176, %180 : vector<8x1xf32>
    %cst_66 = arith.constant 3.125000e-02 : f32
    %182 = vector.broadcast %cst_66 : f32 to vector<8x1xf32>
    %183 = arith.mulf %179, %182 : vector<8x1xf32>
    %184 = arith.mulf %181, %181 : vector<8x1xf32>
    %185 = arith.subf %183, %184 : vector<8x1xf32>
    %186 = vector.broadcast %181 : vector<8x1xf32> to vector<8x32xf32>
    %187 = arith.subf %174, %186 : vector<8x32xf32>
    %cst_67 = arith.constant 9.99999974E-6 : f32
    %188 = vector.broadcast %cst_67 : f32 to vector<8x1xf32>
    %189 = arith.addf %185, %188 : vector<8x1xf32>
    %190 = math.rsqrt %189 : vector<8x1xf32>
    %191 = vector.broadcast %190 : vector<8x1xf32> to vector<8x32xf32>
    %192 = arith.mulf %187, %191 : vector<8x32xf32>
    %193 = vector.extract_strided_slice %97 {offsets = [0, 160], sizes = [8, 32], strides = [1, 1]} : vector<8x288xf32> to vector<8x32xf32>
    %cst_68 = arith.constant dense<0.000000e+00> : vector<8xf32>
    %194 = vector.multi_reduction <add>, %193, %cst_68 [1] : vector<8x32xf32> to vector<8xf32>
    %195 = vector.shape_cast %194 : vector<8xf32> to vector<8x1xf32>
    %196 = arith.mulf %193, %193 : vector<8x32xf32>
    %cst_69 = arith.constant dense<0.000000e+00> : vector<8xf32>
    %197 = vector.multi_reduction <add>, %196, %cst_69 [1] : vector<8x32xf32> to vector<8xf32>
    %198 = vector.shape_cast %197 : vector<8xf32> to vector<8x1xf32>
    %cst_70 = arith.constant 3.125000e-02 : f32
    %199 = vector.broadcast %cst_70 : f32 to vector<8x1xf32>
    %200 = arith.mulf %195, %199 : vector<8x1xf32>
    %cst_71 = arith.constant 3.125000e-02 : f32
    %201 = vector.broadcast %cst_71 : f32 to vector<8x1xf32>
    %202 = arith.mulf %198, %201 : vector<8x1xf32>
    %203 = arith.mulf %200, %200 : vector<8x1xf32>
    %204 = arith.subf %202, %203 : vector<8x1xf32>
    %205 = vector.broadcast %200 : vector<8x1xf32> to vector<8x32xf32>
    %206 = arith.subf %193, %205 : vector<8x32xf32>
    %cst_72 = arith.constant 9.99999974E-6 : f32
    %207 = vector.broadcast %cst_72 : f32 to vector<8x1xf32>
    %208 = arith.addf %204, %207 : vector<8x1xf32>
    %209 = math.rsqrt %208 : vector<8x1xf32>
    %210 = vector.broadcast %209 : vector<8x1xf32> to vector<8x32xf32>
    %211 = arith.mulf %206, %210 : vector<8x32xf32>
    %212 = vector.extract_strided_slice %97 {offsets = [0, 192], sizes = [8, 32], strides = [1, 1]} : vector<8x288xf32> to vector<8x32xf32>
    %cst_73 = arith.constant dense<0.000000e+00> : vector<8xf32>
    %213 = vector.multi_reduction <add>, %212, %cst_73 [1] : vector<8x32xf32> to vector<8xf32>
    %214 = vector.shape_cast %213 : vector<8xf32> to vector<8x1xf32>
    %215 = arith.mulf %212, %212 : vector<8x32xf32>
    %cst_74 = arith.constant dense<0.000000e+00> : vector<8xf32>
    %216 = vector.multi_reduction <add>, %215, %cst_74 [1] : vector<8x32xf32> to vector<8xf32>
    %217 = vector.shape_cast %216 : vector<8xf32> to vector<8x1xf32>
    %cst_75 = arith.constant 3.125000e-02 : f32
    %218 = vector.broadcast %cst_75 : f32 to vector<8x1xf32>
    %219 = arith.mulf %214, %218 : vector<8x1xf32>
    %cst_76 = arith.constant 3.125000e-02 : f32
    %220 = vector.broadcast %cst_76 : f32 to vector<8x1xf32>
    %221 = arith.mulf %217, %220 : vector<8x1xf32>
    %222 = arith.mulf %219, %219 : vector<8x1xf32>
    %223 = arith.subf %221, %222 : vector<8x1xf32>
    %224 = vector.broadcast %219 : vector<8x1xf32> to vector<8x32xf32>
    %225 = arith.subf %212, %224 : vector<8x32xf32>
    %cst_77 = arith.constant 9.99999974E-6 : f32
    %226 = vector.broadcast %cst_77 : f32 to vector<8x1xf32>
    %227 = arith.addf %223, %226 : vector<8x1xf32>
    %228 = math.rsqrt %227 : vector<8x1xf32>
    %229 = vector.broadcast %228 : vector<8x1xf32> to vector<8x32xf32>
    %230 = arith.mulf %225, %229 : vector<8x32xf32>
    %231 = vector.extract_strided_slice %97 {offsets = [0, 224], sizes = [8, 32], strides = [1, 1]} : vector<8x288xf32> to vector<8x32xf32>
    %cst_78 = arith.constant dense<0.000000e+00> : vector<8xf32>
    %232 = vector.multi_reduction <add>, %231, %cst_78 [1] : vector<8x32xf32> to vector<8xf32>
    %233 = vector.shape_cast %232 : vector<8xf32> to vector<8x1xf32>
    %234 = arith.mulf %231, %231 : vector<8x32xf32>
    %cst_79 = arith.constant dense<0.000000e+00> : vector<8xf32>
    %235 = vector.multi_reduction <add>, %234, %cst_79 [1] : vector<8x32xf32> to vector<8xf32>
    %236 = vector.shape_cast %235 : vector<8xf32> to vector<8x1xf32>
    %cst_80 = arith.constant 3.125000e-02 : f32
    %237 = vector.broadcast %cst_80 : f32 to vector<8x1xf32>
    %238 = arith.mulf %233, %237 : vector<8x1xf32>
    %cst_81 = arith.constant 3.125000e-02 : f32
    %239 = vector.broadcast %cst_81 : f32 to vector<8x1xf32>
    %240 = arith.mulf %236, %239 : vector<8x1xf32>
    %241 = arith.mulf %238, %238 : vector<8x1xf32>
    %242 = arith.subf %240, %241 : vector<8x1xf32>
    %243 = vector.broadcast %238 : vector<8x1xf32> to vector<8x32xf32>
    %244 = arith.subf %231, %243 : vector<8x32xf32>
    %cst_82 = arith.constant 9.99999974E-6 : f32
    %245 = vector.broadcast %cst_82 : f32 to vector<8x1xf32>
    %246 = arith.addf %242, %245 : vector<8x1xf32>
    %247 = math.rsqrt %246 : vector<8x1xf32>
    %248 = vector.broadcast %247 : vector<8x1xf32> to vector<8x32xf32>
    %249 = arith.mulf %244, %248 : vector<8x32xf32>
    %250 = vector.extract_strided_slice %97 {offsets = [0, 256], sizes = [8, 32], strides = [1, 1]} : vector<8x288xf32> to vector<8x32xf32>
    %cst_83 = arith.constant dense<0.000000e+00> : vector<8xf32>
    %251 = vector.multi_reduction <add>, %250, %cst_83 [1] : vector<8x32xf32> to vector<8xf32>
    %252 = vector.shape_cast %251 : vector<8xf32> to vector<8x1xf32>
    %253 = arith.mulf %250, %250 : vector<8x32xf32>
    %cst_84 = arith.constant dense<0.000000e+00> : vector<8xf32>
    %254 = vector.multi_reduction <add>, %253, %cst_84 [1] : vector<8x32xf32> to vector<8xf32>
    %255 = vector.shape_cast %254 : vector<8xf32> to vector<8x1xf32>
    %cst_85 = arith.constant 3.125000e-02 : f32
    %256 = vector.broadcast %cst_85 : f32 to vector<8x1xf32>
    %257 = arith.mulf %252, %256 : vector<8x1xf32>
    %cst_86 = arith.constant 3.125000e-02 : f32
    %258 = vector.broadcast %cst_86 : f32 to vector<8x1xf32>
    %259 = arith.mulf %255, %258 : vector<8x1xf32>
    %260 = arith.mulf %257, %257 : vector<8x1xf32>
    %261 = arith.subf %259, %260 : vector<8x1xf32>
    %262 = vector.broadcast %257 : vector<8x1xf32> to vector<8x32xf32>
    %263 = arith.subf %250, %262 : vector<8x32xf32>
    %cst_87 = arith.constant 9.99999974E-6 : f32
    %264 = vector.broadcast %cst_87 : f32 to vector<8x1xf32>
    %265 = arith.addf %261, %264 : vector<8x1xf32>
    %266 = math.rsqrt %265 : vector<8x1xf32>
    %267 = vector.broadcast %266 : vector<8x1xf32> to vector<8x32xf32>
    %268 = arith.mulf %263, %267 : vector<8x32xf32>
    %269 = tpu.concatenate %116, %135, %154, %173, %192, %211, %230, %249, %268 in 1 : vector<8x32xf32>, vector<8x32xf32>, vector<8x32xf32>, vector<8x32xf32>, vector<8x32xf32>, vector<8x32xf32>, vector<8x32xf32>, vector<8x32xf32>, vector<8x32xf32> -> vector<8x288xf32>
    %c0_88 = arith.constant 0 : index
    %c0_89 = arith.constant 0 : index
    %270 = vector.load %arg15[%c0_88, %c0_89] : memref<1x288xf32, #tpu.memory_space<vmem>>, vector<1x288xf32>
    %271 = vector.broadcast %270 : vector<1x288xf32> to vector<8x288xf32>
    %272 = arith.mulf %269, %271 : vector<8x288xf32>
    %c0_90 = arith.constant 0 : index
    %c0_91 = arith.constant 0 : index
    %273 = vector.load %arg16[%c0_90, %c0_91] : memref<1x288xf32, #tpu.memory_space<vmem>>, vector<1x288xf32>
    %274 = vector.broadcast %273 : vector<1x288xf32> to vector<8x288xf32>
    %275 = arith.addf %272, %274 : vector<8x288xf32>
    %cst_92 = arith.constant 0.000000e+00 : f32
    %276 = vector.broadcast %cst_92 : f32 to vector<8x288xf32>
    %277 = arith.maximumf %275, %276 : vector<8x288xf32>
    %c0_93 = arith.constant 0 : index
    %c0_94 = arith.constant 0 : index
    %278 = vector.load %arg17[%c0_93, %c0_94] : memref<288x144xf32, #tpu.memory_space<vmem>>, vector<288x144xf32>
    %cst_95 = arith.constant dense<0.000000e+00> : vector<8x144xf32>
    %279 = tpu.matmul %277, %278, %cst_95 {dimension_numbers = #tpu.dot_dimension_numbers<[1], [0], [0], [1], [0, 0, 1, 1], [], []>} : vector<8x288xf32>, vector<288x144xf32>, vector<8x144xf32> -> vector<8x144xf32>
    %c0_96 = arith.constant 0 : index
    %c0_97 = arith.constant 0 : index
    %280 = vector.load %arg18[%c0_96, %c0_97] : memref<1x144xf32, #tpu.memory_space<vmem>>, vector<1x144xf32>
    %281 = vector.broadcast %280 : vector<1x144xf32> to vector<8x144xf32>
    %282 = arith.addf %279, %281 : vector<8x144xf32>
    %283 = vector.extract_strided_slice %282 {offsets = [0, 0], sizes = [8, 16], strides = [1, 1]} : vector<8x144xf32> to vector<8x16xf32>
    %cst_98 = arith.constant dense<0.000000e+00> : vector<8xf32>
    %284 = vector.multi_reduction <add>, %283, %cst_98 [1] : vector<8x16xf32> to vector<8xf32>
    %285 = vector.shape_cast %284 : vector<8xf32> to vector<8x1xf32>
    %286 = arith.mulf %283, %283 : vector<8x16xf32>
    %cst_99 = arith.constant dense<0.000000e+00> : vector<8xf32>
    %287 = vector.multi_reduction <add>, %286, %cst_99 [1] : vector<8x16xf32> to vector<8xf32>
    %288 = vector.shape_cast %287 : vector<8xf32> to vector<8x1xf32>
    %cst_100 = arith.constant 6.250000e-02 : f32
    %289 = vector.broadcast %cst_100 : f32 to vector<8x1xf32>
    %290 = arith.mulf %285, %289 : vector<8x1xf32>
    %cst_101 = arith.constant 6.250000e-02 : f32
    %291 = vector.broadcast %cst_101 : f32 to vector<8x1xf32>
    %292 = arith.mulf %288, %291 : vector<8x1xf32>
    %293 = arith.mulf %290, %290 : vector<8x1xf32>
    %294 = arith.subf %292, %293 : vector<8x1xf32>
    %295 = vector.broadcast %290 : vector<8x1xf32> to vector<8x16xf32>
    %296 = arith.subf %283, %295 : vector<8x16xf32>
    %cst_102 = arith.constant 9.99999974E-6 : f32
    %297 = vector.broadcast %cst_102 : f32 to vector<8x1xf32>
    %298 = arith.addf %294, %297 : vector<8x1xf32>
    %299 = math.rsqrt %298 : vector<8x1xf32>
    %300 = vector.broadcast %299 : vector<8x1xf32> to vector<8x16xf32>
    %301 = arith.mulf %296, %300 : vector<8x16xf32>
    %302 = vector.extract_strided_slice %282 {offsets = [0, 16], sizes = [8, 16], strides = [1, 1]} : vector<8x144xf32> to vector<8x16xf32>
    %cst_103 = arith.constant dense<0.000000e+00> : vector<8xf32>
    %303 = vector.multi_reduction <add>, %302, %cst_103 [1] : vector<8x16xf32> to vector<8xf32>
    %304 = vector.shape_cast %303 : vector<8xf32> to vector<8x1xf32>
    %305 = arith.mulf %302, %302 : vector<8x16xf32>
    %cst_104 = arith.constant dense<0.000000e+00> : vector<8xf32>
    %306 = vector.multi_reduction <add>, %305, %cst_104 [1] : vector<8x16xf32> to vector<8xf32>
    %307 = vector.shape_cast %306 : vector<8xf32> to vector<8x1xf32>
    %cst_105 = arith.constant 6.250000e-02 : f32
    %308 = vector.broadcast %cst_105 : f32 to vector<8x1xf32>
    %309 = arith.mulf %304, %308 : vector<8x1xf32>
    %cst_106 = arith.constant 6.250000e-02 : f32
    %310 = vector.broadcast %cst_106 : f32 to vector<8x1xf32>
    %311 = arith.mulf %307, %310 : vector<8x1xf32>
    %312 = arith.mulf %309, %309 : vector<8x1xf32>
    %313 = arith.subf %311, %312 : vector<8x1xf32>
    %314 = vector.broadcast %309 : vector<8x1xf32> to vector<8x16xf32>
    %315 = arith.subf %302, %314 : vector<8x16xf32>
    %cst_107 = arith.constant 9.99999974E-6 : f32
    %316 = vector.broadcast %cst_107 : f32 to vector<8x1xf32>
    %317 = arith.addf %313, %316 : vector<8x1xf32>
    %318 = math.rsqrt %317 : vector<8x1xf32>
    %319 = vector.broadcast %318 : vector<8x1xf32> to vector<8x16xf32>
    %320 = arith.mulf %315, %319 : vector<8x16xf32>
    %321 = vector.extract_strided_slice %282 {offsets = [0, 32], sizes = [8, 16], strides = [1, 1]} : vector<8x144xf32> to vector<8x16xf32>
    %cst_108 = arith.constant dense<0.000000e+00> : vector<8xf32>
    %322 = vector.multi_reduction <add>, %321, %cst_108 [1] : vector<8x16xf32> to vector<8xf32>
    %323 = vector.shape_cast %322 : vector<8xf32> to vector<8x1xf32>
    %324 = arith.mulf %321, %321 : vector<8x16xf32>
    %cst_109 = arith.constant dense<0.000000e+00> : vector<8xf32>
    %325 = vector.multi_reduction <add>, %324, %cst_109 [1] : vector<8x16xf32> to vector<8xf32>
    %326 = vector.shape_cast %325 : vector<8xf32> to vector<8x1xf32>
    %cst_110 = arith.constant 6.250000e-02 : f32
    %327 = vector.broadcast %cst_110 : f32 to vector<8x1xf32>
    %328 = arith.mulf %323, %327 : vector<8x1xf32>
    %cst_111 = arith.constant 6.250000e-02 : f32
    %329 = vector.broadcast %cst_111 : f32 to vector<8x1xf32>
    %330 = arith.mulf %326, %329 : vector<8x1xf32>
    %331 = arith.mulf %328, %328 : vector<8x1xf32>
    %332 = arith.subf %330, %331 : vector<8x1xf32>
    %333 = vector.broadcast %328 : vector<8x1xf32> to vector<8x16xf32>
    %334 = arith.subf %321, %333 : vector<8x16xf32>
    %cst_112 = arith.constant 9.99999974E-6 : f32
    %335 = vector.broadcast %cst_112 : f32 to vector<8x1xf32>
    %336 = arith.addf %332, %335 : vector<8x1xf32>
    %337 = math.rsqrt %336 : vector<8x1xf32>
    %338 = vector.broadcast %337 : vector<8x1xf32> to vector<8x16xf32>
    %339 = arith.mulf %334, %338 : vector<8x16xf32>
    %340 = vector.extract_strided_slice %282 {offsets = [0, 48], sizes = [8, 16], strides = [1, 1]} : vector<8x144xf32> to vector<8x16xf32>
    %cst_113 = arith.constant dense<0.000000e+00> : vector<8xf32>
    %341 = vector.multi_reduction <add>, %340, %cst_113 [1] : vector<8x16xf32> to vector<8xf32>
    %342 = vector.shape_cast %341 : vector<8xf32> to vector<8x1xf32>
    %343 = arith.mulf %340, %340 : vector<8x16xf32>
    %cst_114 = arith.constant dense<0.000000e+00> : vector<8xf32>
    %344 = vector.multi_reduction <add>, %343, %cst_114 [1] : vector<8x16xf32> to vector<8xf32>
    %345 = vector.shape_cast %344 : vector<8xf32> to vector<8x1xf32>
    %cst_115 = arith.constant 6.250000e-02 : f32
    %346 = vector.broadcast %cst_115 : f32 to vector<8x1xf32>
    %347 = arith.mulf %342, %346 : vector<8x1xf32>
    %cst_116 = arith.constant 6.250000e-02 : f32
    %348 = vector.broadcast %cst_116 : f32 to vector<8x1xf32>
    %349 = arith.mulf %345, %348 : vector<8x1xf32>
    %350 = arith.mulf %347, %347 : vector<8x1xf32>
    %351 = arith.subf %349, %350 : vector<8x1xf32>
    %352 = vector.broadcast %347 : vector<8x1xf32> to vector<8x16xf32>
    %353 = arith.subf %340, %352 : vector<8x16xf32>
    %cst_117 = arith.constant 9.99999974E-6 : f32
    %354 = vector.broadcast %cst_117 : f32 to vector<8x1xf32>
    %355 = arith.addf %351, %354 : vector<8x1xf32>
    %356 = math.rsqrt %355 : vector<8x1xf32>
    %357 = vector.broadcast %356 : vector<8x1xf32> to vector<8x16xf32>
    %358 = arith.mulf %353, %357 : vector<8x16xf32>
    %359 = vector.extract_strided_slice %282 {offsets = [0, 64], sizes = [8, 16], strides = [1, 1]} : vector<8x144xf32> to vector<8x16xf32>
    %cst_118 = arith.constant dense<0.000000e+00> : vector<8xf32>
    %360 = vector.multi_reduction <add>, %359, %cst_118 [1] : vector<8x16xf32> to vector<8xf32>
    %361 = vector.shape_cast %360 : vector<8xf32> to vector<8x1xf32>
    %362 = arith.mulf %359, %359 : vector<8x16xf32>
    %cst_119 = arith.constant dense<0.000000e+00> : vector<8xf32>
    %363 = vector.multi_reduction <add>, %362, %cst_119 [1] : vector<8x16xf32> to vector<8xf32>
    %364 = vector.shape_cast %363 : vector<8xf32> to vector<8x1xf32>
    %cst_120 = arith.constant 6.250000e-02 : f32
    %365 = vector.broadcast %cst_120 : f32 to vector<8x1xf32>
    %366 = arith.mulf %361, %365 : vector<8x1xf32>
    %cst_121 = arith.constant 6.250000e-02 : f32
    %367 = vector.broadcast %cst_121 : f32 to vector<8x1xf32>
    %368 = arith.mulf %364, %367 : vector<8x1xf32>
    %369 = arith.mulf %366, %366 : vector<8x1xf32>
    %370 = arith.subf %368, %369 : vector<8x1xf32>
    %371 = vector.broadcast %366 : vector<8x1xf32> to vector<8x16xf32>
    %372 = arith.subf %359, %371 : vector<8x16xf32>
    %cst_122 = arith.constant 9.99999974E-6 : f32
    %373 = vector.broadcast %cst_122 : f32 to vector<8x1xf32>
    %374 = arith.addf %370, %373 : vector<8x1xf32>
    %375 = math.rsqrt %374 : vector<8x1xf32>
    %376 = vector.broadcast %375 : vector<8x1xf32> to vector<8x16xf32>
    %377 = arith.mulf %372, %376 : vector<8x16xf32>
    %378 = vector.extract_strided_slice %282 {offsets = [0, 80], sizes = [8, 16], strides = [1, 1]} : vector<8x144xf32> to vector<8x16xf32>
    %cst_123 = arith.constant dense<0.000000e+00> : vector<8xf32>
    %379 = vector.multi_reduction <add>, %378, %cst_123 [1] : vector<8x16xf32> to vector<8xf32>
    %380 = vector.shape_cast %379 : vector<8xf32> to vector<8x1xf32>
    %381 = arith.mulf %378, %378 : vector<8x16xf32>
    %cst_124 = arith.constant dense<0.000000e+00> : vector<8xf32>
    %382 = vector.multi_reduction <add>, %381, %cst_124 [1] : vector<8x16xf32> to vector<8xf32>
    %383 = vector.shape_cast %382 : vector<8xf32> to vector<8x1xf32>
    %cst_125 = arith.constant 6.250000e-02 : f32
    %384 = vector.broadcast %cst_125 : f32 to vector<8x1xf32>
    %385 = arith.mulf %380, %384 : vector<8x1xf32>
    %cst_126 = arith.constant 6.250000e-02 : f32
    %386 = vector.broadcast %cst_126 : f32 to vector<8x1xf32>
    %387 = arith.mulf %383, %386 : vector<8x1xf32>
    %388 = arith.mulf %385, %385 : vector<8x1xf32>
    %389 = arith.subf %387, %388 : vector<8x1xf32>
    %390 = vector.broadcast %385 : vector<8x1xf32> to vector<8x16xf32>
    %391 = arith.subf %378, %390 : vector<8x16xf32>
    %cst_127 = arith.constant 9.99999974E-6 : f32
    %392 = vector.broadcast %cst_127 : f32 to vector<8x1xf32>
    %393 = arith.addf %389, %392 : vector<8x1xf32>
    %394 = math.rsqrt %393 : vector<8x1xf32>
    %395 = vector.broadcast %394 : vector<8x1xf32> to vector<8x16xf32>
    %396 = arith.mulf %391, %395 : vector<8x16xf32>
    %397 = vector.extract_strided_slice %282 {offsets = [0, 96], sizes = [8, 16], strides = [1, 1]} : vector<8x144xf32> to vector<8x16xf32>
    %cst_128 = arith.constant dense<0.000000e+00> : vector<8xf32>
    %398 = vector.multi_reduction <add>, %397, %cst_128 [1] : vector<8x16xf32> to vector<8xf32>
    %399 = vector.shape_cast %398 : vector<8xf32> to vector<8x1xf32>
    %400 = arith.mulf %397, %397 : vector<8x16xf32>
    %cst_129 = arith.constant dense<0.000000e+00> : vector<8xf32>
    %401 = vector.multi_reduction <add>, %400, %cst_129 [1] : vector<8x16xf32> to vector<8xf32>
    %402 = vector.shape_cast %401 : vector<8xf32> to vector<8x1xf32>
    %cst_130 = arith.constant 6.250000e-02 : f32
    %403 = vector.broadcast %cst_130 : f32 to vector<8x1xf32>
    %404 = arith.mulf %399, %403 : vector<8x1xf32>
    %cst_131 = arith.constant 6.250000e-02 : f32
    %405 = vector.broadcast %cst_131 : f32 to vector<8x1xf32>
    %406 = arith.mulf %402, %405 : vector<8x1xf32>
    %407 = arith.mulf %404, %404 : vector<8x1xf32>
    %408 = arith.subf %406, %407 : vector<8x1xf32>
    %409 = vector.broadcast %404 : vector<8x1xf32> to vector<8x16xf32>
    %410 = arith.subf %397, %409 : vector<8x16xf32>
    %cst_132 = arith.constant 9.99999974E-6 : f32
    %411 = vector.broadcast %cst_132 : f32 to vector<8x1xf32>
    %412 = arith.addf %408, %411 : vector<8x1xf32>
    %413 = math.rsqrt %412 : vector<8x1xf32>
    %414 = vector.broadcast %413 : vector<8x1xf32> to vector<8x16xf32>
    %415 = arith.mulf %410, %414 : vector<8x16xf32>
    %416 = vector.extract_strided_slice %282 {offsets = [0, 112], sizes = [8, 16], strides = [1, 1]} : vector<8x144xf32> to vector<8x16xf32>
    %cst_133 = arith.constant dense<0.000000e+00> : vector<8xf32>
    %417 = vector.multi_reduction <add>, %416, %cst_133 [1] : vector<8x16xf32> to vector<8xf32>
    %418 = vector.shape_cast %417 : vector<8xf32> to vector<8x1xf32>
    %419 = arith.mulf %416, %416 : vector<8x16xf32>
    %cst_134 = arith.constant dense<0.000000e+00> : vector<8xf32>
    %420 = vector.multi_reduction <add>, %419, %cst_134 [1] : vector<8x16xf32> to vector<8xf32>
    %421 = vector.shape_cast %420 : vector<8xf32> to vector<8x1xf32>
    %cst_135 = arith.constant 6.250000e-02 : f32
    %422 = vector.broadcast %cst_135 : f32 to vector<8x1xf32>
    %423 = arith.mulf %418, %422 : vector<8x1xf32>
    %cst_136 = arith.constant 6.250000e-02 : f32
    %424 = vector.broadcast %cst_136 : f32 to vector<8x1xf32>
    %425 = arith.mulf %421, %424 : vector<8x1xf32>
    %426 = arith.mulf %423, %423 : vector<8x1xf32>
    %427 = arith.subf %425, %426 : vector<8x1xf32>
    %428 = vector.broadcast %423 : vector<8x1xf32> to vector<8x16xf32>
    %429 = arith.subf %416, %428 : vector<8x16xf32>
    %cst_137 = arith.constant 9.99999974E-6 : f32
    %430 = vector.broadcast %cst_137 : f32 to vector<8x1xf32>
    %431 = arith.addf %427, %430 : vector<8x1xf32>
    %432 = math.rsqrt %431 : vector<8x1xf32>
    %433 = vector.broadcast %432 : vector<8x1xf32> to vector<8x16xf32>
    %434 = arith.mulf %429, %433 : vector<8x16xf32>
    %435 = vector.extract_strided_slice %282 {offsets = [0, 128], sizes = [8, 16], strides = [1, 1]} : vector<8x144xf32> to vector<8x16xf32>
    %cst_138 = arith.constant dense<0.000000e+00> : vector<8xf32>
    %436 = vector.multi_reduction <add>, %435, %cst_138 [1] : vector<8x16xf32> to vector<8xf32>
    %437 = vector.shape_cast %436 : vector<8xf32> to vector<8x1xf32>
    %438 = arith.mulf %435, %435 : vector<8x16xf32>
    %cst_139 = arith.constant dense<0.000000e+00> : vector<8xf32>
    %439 = vector.multi_reduction <add>, %438, %cst_139 [1] : vector<8x16xf32> to vector<8xf32>
    %440 = vector.shape_cast %439 : vector<8xf32> to vector<8x1xf32>
    %cst_140 = arith.constant 6.250000e-02 : f32
    %441 = vector.broadcast %cst_140 : f32 to vector<8x1xf32>
    %442 = arith.mulf %437, %441 : vector<8x1xf32>
    %cst_141 = arith.constant 6.250000e-02 : f32
    %443 = vector.broadcast %cst_141 : f32 to vector<8x1xf32>
    %444 = arith.mulf %440, %443 : vector<8x1xf32>
    %445 = arith.mulf %442, %442 : vector<8x1xf32>
    %446 = arith.subf %444, %445 : vector<8x1xf32>
    %447 = vector.broadcast %442 : vector<8x1xf32> to vector<8x16xf32>
    %448 = arith.subf %435, %447 : vector<8x16xf32>
    %cst_142 = arith.constant 9.99999974E-6 : f32
    %449 = vector.broadcast %cst_142 : f32 to vector<8x1xf32>
    %450 = arith.addf %446, %449 : vector<8x1xf32>
    %451 = math.rsqrt %450 : vector<8x1xf32>
    %452 = vector.broadcast %451 : vector<8x1xf32> to vector<8x16xf32>
    %453 = arith.mulf %448, %452 : vector<8x16xf32>
    %454 = tpu.concatenate %301, %320, %339, %358, %377, %396, %415, %434, %453 in 1 : vector<8x16xf32>, vector<8x16xf32>, vector<8x16xf32>, vector<8x16xf32>, vector<8x16xf32>, vector<8x16xf32>, vector<8x16xf32>, vector<8x16xf32>, vector<8x16xf32> -> vector<8x144xf32>
    %c0_143 = arith.constant 0 : index
    %c0_144 = arith.constant 0 : index
    %455 = vector.load %arg19[%c0_143, %c0_144] : memref<1x144xf32, #tpu.memory_space<vmem>>, vector<1x144xf32>
    %456 = vector.broadcast %455 : vector<1x144xf32> to vector<8x144xf32>
    %457 = arith.mulf %454, %456 : vector<8x144xf32>
    %c0_145 = arith.constant 0 : index
    %c0_146 = arith.constant 0 : index
    %458 = vector.load %arg20[%c0_145, %c0_146] : memref<1x144xf32, #tpu.memory_space<vmem>>, vector<1x144xf32>
    %459 = vector.broadcast %458 : vector<1x144xf32> to vector<8x144xf32>
    %460 = arith.addf %457, %459 : vector<8x144xf32>
    %cst_147 = arith.constant 0.000000e+00 : f32
    %461 = vector.broadcast %cst_147 : f32 to vector<8x144xf32>
    %462 = arith.maximumf %460, %461 : vector<8x144xf32>
    %c0_148 = arith.constant 0 : index
    %c0_149 = arith.constant 0 : index
    %463 = vector.load %arg21[%c0_148, %c0_149] : memref<32x4xf32, #tpu.memory_space<vmem>>, vector<32x4xf32>
    %cst_150 = arith.constant dense<0.000000e+00> : vector<8x4xf32>
    %464 = tpu.matmul %92, %463, %cst_150 {dimension_numbers = #tpu.dot_dimension_numbers<[1], [0], [0], [1], [0, 0, 1, 1], [], []>} : vector<8x32xf32>, vector<32x4xf32>, vector<8x4xf32> -> vector<8x4xf32>
    %c0_151 = arith.constant 0 : index
    %c0_152 = arith.constant 0 : index
    %465 = vector.load %arg22[%c0_151, %c0_152] : memref<1x4xf32, #tpu.memory_space<vmem>>, vector<1x4xf32>
    %466 = vector.broadcast %465 : vector<1x4xf32> to vector<8x4xf32>
    %467 = arith.addf %464, %466 : vector<8x4xf32>
    %cst_153 = arith.constant dense<0xFF800000> : vector<8xf32>
    %468 = vector.multi_reduction <maximumf>, %467, %cst_153 [1] : vector<8x4xf32> to vector<8xf32>
    %469 = vector.shape_cast %468 : vector<8xf32> to vector<8x1xf32>
    %470 = vector.broadcast %469 : vector<8x1xf32> to vector<8x4xf32>
    %471 = arith.subf %467, %470 : vector<8x4xf32>
    %472 = math.exp %471 : vector<8x4xf32>
    %cst_154 = arith.constant dense<0.000000e+00> : vector<8xf32>
    %473 = vector.multi_reduction <add>, %472, %cst_154 [1] : vector<8x4xf32> to vector<8xf32>
    %474 = vector.shape_cast %473 : vector<8xf32> to vector<8x1xf32>
    %475 = vector.broadcast %474 : vector<8x1xf32> to vector<8x4xf32>
    %476 = arith.divf %472, %475 : vector<8x4xf32>
    %cst_155 = arith.constant 0.000000e+00 : f32
    %477 = vector.broadcast %cst_155 : f32 to vector<8x16xf32>
    %478 = vector.extract_strided_slice %476 {offsets = [0, 0], sizes = [8, 1], strides = [1, 1]} : vector<8x4xf32> to vector<8x1xf32>
    %479 = vector.extract_strided_slice %462 {offsets = [0, 0], sizes = [8, 16], strides = [1, 1]} : vector<8x144xf32> to vector<8x16xf32>
    %480 = vector.broadcast %478 : vector<8x1xf32> to vector<8x16xf32>
    %481 = arith.mulf %480, %479 : vector<8x16xf32>
    %482 = arith.addf %477, %481 : vector<8x16xf32>
    %483 = vector.extract_strided_slice %476 {offsets = [0, 1], sizes = [8, 1], strides = [1, 1]} : vector<8x4xf32> to vector<8x1xf32>
    %484 = vector.extract_strided_slice %462 {offsets = [0, 16], sizes = [8, 16], strides = [1, 1]} : vector<8x144xf32> to vector<8x16xf32>
    %485 = vector.broadcast %483 : vector<8x1xf32> to vector<8x16xf32>
    %486 = arith.mulf %485, %484 : vector<8x16xf32>
    %487 = arith.addf %482, %486 : vector<8x16xf32>
    %488 = vector.extract_strided_slice %476 {offsets = [0, 2], sizes = [8, 1], strides = [1, 1]} : vector<8x4xf32> to vector<8x1xf32>
    %489 = vector.extract_strided_slice %462 {offsets = [0, 32], sizes = [8, 16], strides = [1, 1]} : vector<8x144xf32> to vector<8x16xf32>
    %490 = vector.broadcast %488 : vector<8x1xf32> to vector<8x16xf32>
    %491 = arith.mulf %490, %489 : vector<8x16xf32>
    %492 = arith.addf %487, %491 : vector<8x16xf32>
    %493 = vector.extract_strided_slice %476 {offsets = [0, 3], sizes = [8, 1], strides = [1, 1]} : vector<8x4xf32> to vector<8x1xf32>
    %494 = vector.extract_strided_slice %462 {offsets = [0, 48], sizes = [8, 16], strides = [1, 1]} : vector<8x144xf32> to vector<8x16xf32>
    %495 = vector.broadcast %493 : vector<8x1xf32> to vector<8x16xf32>
    %496 = arith.mulf %495, %494 : vector<8x16xf32>
    %497 = arith.addf %492, %496 : vector<8x16xf32>
    %498 = vector.extract_strided_slice %462 {offsets = [0, 64], sizes = [8, 48], strides = [1, 1]} : vector<8x144xf32> to vector<8x48xf32>
    %499 = vector.extract_strided_slice %462 {offsets = [0, 112], sizes = [8, 32], strides = [1, 1]} : vector<8x144xf32> to vector<8x32xf32>
    %c0_156 = arith.constant 0 : index
    %c0_157 = arith.constant 0 : index
    %500 = vector.load %arg23[%c0_156, %c0_157] : memref<16x96xf32, #tpu.memory_space<vmem>>, vector<16x96xf32>
    %cst_158 = arith.constant dense<0.000000e+00> : vector<8x96xf32>
    %501 = tpu.matmul %497, %500, %cst_158 {dimension_numbers = #tpu.dot_dimension_numbers<[1], [0], [0], [1], [0, 0, 1, 1], [], []>} : vector<8x16xf32>, vector<16x96xf32>, vector<8x96xf32> -> vector<8x96xf32>
    %c0_159 = arith.constant 0 : index
    %c0_160 = arith.constant 0 : index
    %502 = vector.load %arg24[%c0_159, %c0_160] : memref<48x96xf32, #tpu.memory_space<vmem>>, vector<48x96xf32>
    %cst_161 = arith.constant dense<0.000000e+00> : vector<8x96xf32>
    %503 = tpu.matmul %498, %502, %cst_161 {dimension_numbers = #tpu.dot_dimension_numbers<[1], [0], [0], [1], [0, 0, 1, 1], [], []>} : vector<8x48xf32>, vector<48x96xf32>, vector<8x96xf32> -> vector<8x96xf32>
    %504 = arith.addf %501, %503 : vector<8x96xf32>
    %c0_162 = arith.constant 0 : index
    %c0_163 = arith.constant 0 : index
    %505 = vector.load %arg25[%c0_162, %c0_163] : memref<32x96xf32, #tpu.memory_space<vmem>>, vector<32x96xf32>
    %cst_164 = arith.constant dense<0.000000e+00> : vector<8x96xf32>
    %506 = tpu.matmul %499, %505, %cst_164 {dimension_numbers = #tpu.dot_dimension_numbers<[1], [0], [0], [1], [0, 0, 1, 1], [], []>} : vector<8x32xf32>, vector<32x96xf32>, vector<8x96xf32> -> vector<8x96xf32>
    %507 = arith.addf %504, %506 : vector<8x96xf32>
    %c0_165 = arith.constant 0 : index
    %c0_166 = arith.constant 0 : index
    %508 = vector.load %arg26[%c0_165, %c0_166] : memref<1x96xf32, #tpu.memory_space<vmem>>, vector<1x96xf32>
    %509 = vector.broadcast %508 : vector<1x96xf32> to vector<8x96xf32>
    %510 = arith.addf %507, %509 : vector<8x96xf32>
    %cst_167 = arith.constant 0.000000e+00 : f32
    %511 = vector.broadcast %cst_167 : f32 to vector<8x96xf32>
    %512 = arith.maximumf %510, %511 : vector<8x96xf32>
    %c0_168 = arith.constant 0 : index
    %c0_169 = arith.constant 0 : index
    %513 = vector.load %arg27[%c0_168, %c0_169] : memref<96x6xf32, #tpu.memory_space<vmem>>, vector<96x6xf32>
    %cst_170 = arith.constant dense<0.000000e+00> : vector<8x6xf32>
    %514 = tpu.matmul %512, %513, %cst_170 {dimension_numbers = #tpu.dot_dimension_numbers<[1], [0], [0], [1], [0, 0, 1, 1], [], []>} : vector<8x96xf32>, vector<96x6xf32>, vector<8x6xf32> -> vector<8x6xf32>
    %c0_171 = arith.constant 0 : index
    %c0_172 = arith.constant 0 : index
    %515 = vector.load %arg28[%c0_171, %c0_172] : memref<1x6xf32, #tpu.memory_space<vmem>>, vector<1x6xf32>
    %516 = vector.broadcast %515 : vector<1x6xf32> to vector<8x6xf32>
    %517 = arith.addf %514, %516 : vector<8x6xf32>
    %518 = arith.negf %517 : vector<8x6xf32>
    %519 = math.exp %518 : vector<8x6xf32>
    %cst_173 = arith.constant 1.000000e+00 : f32
    %520 = vector.broadcast %cst_173 : f32 to vector<8x6xf32>
    %521 = arith.addf %520, %519 : vector<8x6xf32>
    %522 = arith.divf %520, %521 : vector<8x6xf32>
    %523 = tpu.concatenate %1, %1 in 1 : vector<8x3xf32>, vector<8x3xf32> -> vector<8x6xf32>
    %524 = arith.mulf %522, %523 : vector<8x6xf32>
    %525 = vector.extract_strided_slice %524 {offsets = [0, 0], sizes = [8, 3], strides = [1, 1]} : vector<8x6xf32> to vector<8x3xf32>
    %cst_174 = arith.constant dense<0.000000e+00> : vector<8xf32>
    %526 = vector.multi_reduction <add>, %525, %cst_174 [1] : vector<8x3xf32> to vector<8xf32>
    %527 = vector.shape_cast %526 : vector<8xf32> to vector<8x1xf32>
    %528 = vector.extract_strided_slice %524 {offsets = [0, 3], sizes = [8, 3], strides = [1, 1]} : vector<8x6xf32> to vector<8x3xf32>
    %cst_175 = arith.constant dense<0.000000e+00> : vector<8xf32>
    %529 = vector.multi_reduction <add>, %528, %cst_175 [1] : vector<8x3xf32> to vector<8xf32>
    %530 = vector.shape_cast %529 : vector<8xf32> to vector<8x1xf32>
    %531 = tpu.concatenate %527, %530 in 1 : vector<8x1xf32>, vector<8x1xf32> -> vector<8x2xf32>
    %c0_176 = arith.constant 0 : index
    %c0_177 = arith.constant 0 : index
    %532 = vector.load %arg29[%c0_176, %c0_177] : memref<8x2xf32, #tpu.memory_space<vmem>>, vector<8x2xf32>
    tpu.vector_store %arg29[%c0_176, %c0_177], %531 {strides = array<i32>} : memref<8x2xf32, #tpu.memory_space<vmem>>, vector<8x2xf32>,
    return
  }
  func.func @transform_0(%arg0: i32) -> (i32, i32) {
    %c0_i32 = arith.constant 0 : i32
    %c0_i32_0 = arith.constant 0 : i32
    return %arg0, %c0_i32 : i32, i32
  }
  func.func @transform_1(%arg0: i32) -> (i32, i32) {
    %c0_i32 = arith.constant 0 : i32
    %c0_i32_0 = arith.constant 0 : i32
    return %arg0, %c0_i32 : i32, i32
  }
  func.func @transform_2(%arg0: i32) -> (i32, i32) {
    %c0_i32 = arith.constant 0 : i32
    %c0_i32_0 = arith.constant 0 : i32
    %c0_i32_1 = arith.constant 0 : i32
    return %c0_i32, %c0_i32_0 : i32, i32
  }
  func.func @transform_3(%arg0: i32) -> (i32, i32) {
    %c0_i32 = arith.constant 0 : i32
    %c0_i32_0 = arith.constant 0 : i32
    %c0_i32_1 = arith.constant 0 : i32
    return %c0_i32, %c0_i32_0 : i32, i32
  }
  func.func @transform_4(%arg0: i32) -> (i32, i32) {
    %c0_i32 = arith.constant 0 : i32
    %c0_i32_0 = arith.constant 0 : i32
    %c0_i32_1 = arith.constant 0 : i32
    return %c0_i32, %c0_i32_0 : i32, i32
  }
  func.func @transform_5(%arg0: i32) -> (i32, i32) {
    %c0_i32 = arith.constant 0 : i32
    %c0_i32_0 = arith.constant 0 : i32
    %c0_i32_1 = arith.constant 0 : i32
    return %c0_i32, %c0_i32_0 : i32, i32
  }
  func.func @transform_6(%arg0: i32) -> (i32, i32) {
    %c0_i32 = arith.constant 0 : i32
    %c0_i32_0 = arith.constant 0 : i32
    %c0_i32_1 = arith.constant 0 : i32
    return %c0_i32, %c0_i32_0 : i32, i32
  }
  func.func @transform_7(%arg0: i32) -> (i32, i32) {
    %c0_i32 = arith.constant 0 : i32
    %c0_i32_0 = arith.constant 0 : i32
    %c0_i32_1 = arith.constant 0 : i32
    return %c0_i32, %c0_i32_0 : i32, i32
  }
  func.func @transform_8(%arg0: i32) -> (i32, i32) {
    %c0_i32 = arith.constant 0 : i32
    %c0_i32_0 = arith.constant 0 : i32
    %c0_i32_1 = arith.constant 0 : i32
    return %c0_i32, %c0_i32_0 : i32, i32
  }
  func.func @transform_9(%arg0: i32) -> (i32, i32) {
    %c0_i32 = arith.constant 0 : i32
    %c0_i32_0 = arith.constant 0 : i32
    %c0_i32_1 = arith.constant 0 : i32
    return %c0_i32, %c0_i32_0 : i32, i32
  }
  func.func @transform_10(%arg0: i32) -> (i32, i32) {
    %c0_i32 = arith.constant 0 : i32
    %c0_i32_0 = arith.constant 0 : i32
    %c0_i32_1 = arith.constant 0 : i32
    return %c0_i32, %c0_i32_0 : i32, i32
  }
  func.func @transform_11(%arg0: i32) -> (i32, i32) {
    %c0_i32 = arith.constant 0 : i32
    %c0_i32_0 = arith.constant 0 : i32
    %c0_i32_1 = arith.constant 0 : i32
    return %c0_i32, %c0_i32_0 : i32, i32
  }
  func.func @transform_12(%arg0: i32) -> (i32, i32) {
    %c0_i32 = arith.constant 0 : i32
    %c0_i32_0 = arith.constant 0 : i32
    %c0_i32_1 = arith.constant 0 : i32
    return %c0_i32, %c0_i32_0 : i32, i32
  }
  func.func @transform_13(%arg0: i32) -> (i32, i32) {
    %c0_i32 = arith.constant 0 : i32
    %c0_i32_0 = arith.constant 0 : i32
    %c0_i32_1 = arith.constant 0 : i32
    return %c0_i32, %c0_i32_0 : i32, i32
  }
  func.func @transform_14(%arg0: i32) -> (i32, i32) {
    %c0_i32 = arith.constant 0 : i32
    %c0_i32_0 = arith.constant 0 : i32
    %c0_i32_1 = arith.constant 0 : i32
    return %c0_i32, %c0_i32_0 : i32, i32
  }
  func.func @transform_15(%arg0: i32) -> (i32, i32) {
    %c0_i32 = arith.constant 0 : i32
    %c0_i32_0 = arith.constant 0 : i32
    %c0_i32_1 = arith.constant 0 : i32
    return %c0_i32, %c0_i32_0 : i32, i32
  }
  func.func @transform_16(%arg0: i32) -> (i32, i32) {
    %c0_i32 = arith.constant 0 : i32
    %c0_i32_0 = arith.constant 0 : i32
    %c0_i32_1 = arith.constant 0 : i32
    return %c0_i32, %c0_i32_0 : i32, i32
  }
  func.func @transform_17(%arg0: i32) -> (i32, i32) {
    %c0_i32 = arith.constant 0 : i32
    %c0_i32_0 = arith.constant 0 : i32
    %c0_i32_1 = arith.constant 0 : i32
    return %c0_i32, %c0_i32_0 : i32, i32
  }
  func.func @transform_18(%arg0: i32) -> (i32, i32) {
    %c0_i32 = arith.constant 0 : i32
    %c0_i32_0 = arith.constant 0 : i32
    %c0_i32_1 = arith.constant 0 : i32
    return %c0_i32, %c0_i32_0 : i32, i32
  }
  func.func @transform_19(%arg0: i32) -> (i32, i32) {
    %c0_i32 = arith.constant 0 : i32
    %c0_i32_0 = arith.constant 0 : i32
    %c0_i32_1 = arith.constant 0 : i32
    return %c0_i32, %c0_i32_0 : i32, i32
  }
  func.func @transform_20(%arg0: i32) -> (i32, i32) {
    %c0_i32 = arith.constant 0 : i32
    %c0_i32_0 = arith.constant 0 : i32
    %c0_i32_1 = arith.constant 0 : i32
    return %c0_i32, %c0_i32_0 : i32, i32
  }
  func.func @transform_21(%arg0: i32) -> (i32, i32) {
    %c0_i32 = arith.constant 0 : i32
    %c0_i32_0 = arith.constant 0 : i32
    %c0_i32_1 = arith.constant 0 : i32
    return %c0_i32, %c0_i32_0 : i32, i32
  }
  func.func @transform_22(%arg0: i32) -> (i32, i32) {
    %c0_i32 = arith.constant 0 : i32
    %c0_i32_0 = arith.constant 0 : i32
    %c0_i32_1 = arith.constant 0 : i32
    return %c0_i32, %c0_i32_0 : i32, i32
  }
  func.func @transform_23(%arg0: i32) -> (i32, i32) {
    %c0_i32 = arith.constant 0 : i32
    %c0_i32_0 = arith.constant 0 : i32
    %c0_i32_1 = arith.constant 0 : i32
    return %c0_i32, %c0_i32_0 : i32, i32
  }
  func.func @transform_24(%arg0: i32) -> (i32, i32) {
    %c0_i32 = arith.constant 0 : i32
    %c0_i32_0 = arith.constant 0 : i32
    %c0_i32_1 = arith.constant 0 : i32
    return %c0_i32, %c0_i32_0 : i32, i32
  }
  func.func @transform_25(%arg0: i32) -> (i32, i32) {
    %c0_i32 = arith.constant 0 : i32
    %c0_i32_0 = arith.constant 0 : i32
    %c0_i32_1 = arith.constant 0 : i32
    return %c0_i32, %c0_i32_0 : i32, i32
  }
  func.func @transform_26(%arg0: i32) -> (i32, i32) {
    %c0_i32 = arith.constant 0 : i32
    %c0_i32_0 = arith.constant 0 : i32
    %c0_i32_1 = arith.constant 0 : i32
    return %c0_i32, %c0_i32_0 : i32, i32
  }
  func.func @transform_27(%arg0: i32) -> (i32, i32) {
    %c0_i32 = arith.constant 0 : i32
    %c0_i32_0 = arith.constant 0 : i32
    %c0_i32_1 = arith.constant 0 : i32
    return %c0_i32, %c0_i32_0 : i32, i32
  }
  func.func @transform_28(%arg0: i32) -> (i32, i32) {
    %c0_i32 = arith.constant 0 : i32
    %c0_i32_0 = arith.constant 0 : i32
    return %arg0, %c0_i32 : i32, i32
  }
}

</mosaic_0001>

<llo_original>
// kernel: forward.1
$region0: #{forward.1}
  #allocation0 [shape = 'u32[]', space=smem, size = 0x4, offset = 0x4, fixed_abs, tag = 'smem constant byte address 0x4 - core index']
  #allocation1 [shape = 'u32[72,128]{1,0:T(1,128)}', space=vmem, size = 0x9000, scoped, tag = 'internal scratch']
  %s0 = inlined_call_operand.vmem [shape: f32[8,32], index: 0, kind: input, shape index: {}]
  %s1 = inlined_call_operand.vmem [shape: f32[8,3], index: 1, kind: input, shape index: {}]
  %s2 = inlined_call_operand.vmem [shape: f32[32,32], index: 2, kind: input, shape index: {}]
  %s3 = inlined_call_operand.vmem [shape: f32[1,32], index: 3, kind: input, shape index: {}]
  %s4 = inlined_call_operand.vmem [shape: f32[1,32], index: 4, kind: input, shape index: {}]
  %s5 = inlined_call_operand.vmem [shape: f32[1,32], index: 5, kind: input, shape index: {}]
  %s6 = inlined_call_operand.vmem [shape: f32[32,192], index: 6, kind: input, shape index: {}]
  %s7 = inlined_call_operand.vmem [shape: f32[3,64], index: 7, kind: input, shape index: {}]
  %s8 = inlined_call_operand.vmem [shape: f32[64,32], index: 8, kind: input, shape index: {}]
  %s9 = inlined_call_operand.vmem [shape: f32[1,32], index: 9, kind: input, shape index: {}]
  %s10 = inlined_call_operand.vmem [shape: f32[1,32], index: 10, kind: input, shape index: {}]
  %s11 = inlined_call_operand.vmem [shape: f32[1,32], index: 11, kind: input, shape index: {}]
  %s12 = inlined_call_operand.vmem [shape: f32[32,288], index: 12, kind: input, shape index: {}]
  %s13 = inlined_call_operand.vmem [shape: f32[1,288], index: 13, kind: input, shape index: {}]
  %s14 = inlined_call_operand.vmem [shape: f32[1,288], index: 14, kind: input, shape index: {}]
  %s15 = inlined_call_operand.vmem [shape: f32[1,288], index: 15, kind: input, shape index: {}]
  %s16 = inlined_call_operand.vmem [shape: f32[288,144], index: 16, kind: input, shape index: {}]
  %s17 = inlined_call_operand.vmem [shape: f32[1,144], index: 17, kind: input, shape index: {}]
  %s18 = inlined_call_operand.vmem [shape: f32[1,144], index: 18, kind: input, shape index: {}]
  %s19 = inlined_call_operand.vmem [shape: f32[1,144], index: 19, kind: input, shape index: {}]
  %s20 = inlined_call_operand.vmem [shape: f32[32,4], index: 20, kind: input, shape index: {}]
  %s21 = inlined_call_operand.vmem [shape: f32[1,4], index: 21, kind: input, shape index: {}]
  %s22 = inlined_call_operand.vmem [shape: f32[16,96], index: 22, kind: input, shape index: {}]
  %s23 = inlined_call_operand.vmem [shape: f32[48,96], index: 23, kind: input, shape index: {}]
  %s24 = inlined_call_operand.vmem [shape: f32[32,96], index: 24, kind: input, shape index: {}]
  %s25 = inlined_call_operand.vmem [shape: f32[1,96], index: 25, kind: input, shape index: {}]
  %s26 = inlined_call_operand.vmem [shape: f32[96,6], index: 26, kind: input, shape index: {}]
  %s27 = inlined_call_operand.vmem [shape: f32[1,6], index: 27, kind: input, shape index: {}]
  %s28 = inlined_call_operand.vmem [shape: f32[8,2], index: 28, kind: output, shape index: {}]
  %s29 = sld [smem:[#allocation0]]
  $region122: #{forward.1} parent=0
    _
  %s31 = ssub.s32 1, %s29
  %s32 = scalar_select 0, %s31, %s29
  // Predicated region
  $region2: #{forward.1} parent=0 // pred_check
    _
  $region3: #{forward.1} parent=0 // pred_check_branch
    %34 = sbr.rel (0) target = $region5
  $region4: #{forward.1} parent=0 // pred_region
    _
  $region5: #{forward.1} parent=0 // pred_fallthru
    _
  // Predicated region
  $region6: #{forward.1} parent=0 // pred_check
    _
  $region7: #{forward.1} parent=0 // pred_check_branch
    %36 = sbr.rel (0) target = $region9
  $region8: #{forward.1} parent=0 // pred_region
    _
  $region9: #{forward.1} parent=0 // pred_fallthru
    _
  // Predicated region
  $region10: #{forward.1} parent=0 // pred_check
    _
  $region11: #{forward.1} parent=0 // pred_check_branch
    %38 = sbr.rel (0) target = $region13
  $region12: #{forward.1} parent=0 // pred_region
    _
  $region13: #{forward.1} parent=0 // pred_fallthru
    _
  // Predicated region
  $region14: #{forward.1} parent=0 // pred_check
    _
  $region15: #{forward.1} parent=0 // pred_check_branch
    %40 = sbr.rel (0) target = $region17
  $region16: #{forward.1} parent=0 // pred_region
    _
  $region17: #{forward.1} parent=0 // pred_fallthru
    _
  // Predicated region
  $region18: #{forward.1} parent=0 // pred_check
    _
  $region19: #{forward.1} parent=0 // pred_check_branch
    %42 = sbr.rel (0) target = $region21
  $region20: #{forward.1} parent=0 // pred_region
    _
  $region21: #{forward.1} parent=0 // pred_fallthru
    _
  // Predicated region
  $region22: #{forward.1} parent=0 // pred_check
    _
  $region23: #{forward.1} parent=0 // pred_check_branch
    %44 = sbr.rel (0) target = $region25
  $region24: #{forward.1} parent=0 // pred_region
    _
  $region25: #{forward.1} parent=0 // pred_fallthru
    _
  // Predicated region
  $region26: #{forward.1} parent=0 // pred_check
    _
  $region27: #{forward.1} parent=0 // pred_check_branch
    %46 = sbr.rel (0) target = $region29
  $region28: #{forward.1} parent=0 // pred_region
    _
  $region29: #{forward.1} parent=0 // pred_fallthru
    _
  // Predicated region
  $region30: #{forward.1} parent=0 // pred_check
    _
  $region31: #{forward.1} parent=0 // pred_check_branch
    %48 = sbr.rel (0) target = $region33
  $region32: #{forward.1} parent=0 // pred_region
    _
  $region33: #{forward.1} parent=0 // pred_fallthru
    _
  // Predicated region
  $region34: #{forward.1} parent=0 // pred_check
    _
  $region35: #{forward.1} parent=0 // pred_check_branch
    %50 = sbr.rel (0) target = $region37
  $region36: #{forward.1} parent=0 // pred_region
    _
  $region37: #{forward.1} parent=0 // pred_fallthru
    _
  // Predicated region
  $region38: #{forward.1} parent=0 // pred_check
    _
  $region39: #{forward.1} parent=0 // pred_check_branch
    %52 = sbr.rel (0) target = $region41
  $region40: #{forward.1} parent=0 // pred_region
    _
  $region41: #{forward.1} parent=0 // pred_fallthru
    _
  // Predicated region
  $region42: #{forward.1} parent=0 // pred_check
    _
  $region43: #{forward.1} parent=0 // pred_check_branch
    %54 = sbr.rel (0) target = $region45
  $region44: #{forward.1} parent=0 // pred_region
    _
  $region45: #{forward.1} parent=0 // pred_fallthru
    _
  // Predicated region
  $region46: #{forward.1} parent=0 // pred_check
    _
  $region47: #{forward.1} parent=0 // pred_check_branch
    %56 = sbr.rel (0) target = $region49
  $region48: #{forward.1} parent=0 // pred_region
    _
  $region49: #{forward.1} parent=0 // pred_fallthru
    _
  // Predicated region
  $region50: #{forward.1} parent=0 // pred_check
    _
  $region51: #{forward.1} parent=0 // pred_check_branch
    %58 = sbr.rel (0) target = $region53
  $region52: #{forward.1} parent=0 // pred_region
    _
  $region53: #{forward.1} parent=0 // pred_fallthru
    _
  // Predicated region
  $region54: #{forward.1} parent=0 // pred_check
    _
  $region55: #{forward.1} parent=0 // pred_check_branch
    %60 = sbr.rel (0) target = $region57
  $region56: #{forward.1} parent=0 // pred_region
    _
  $region57: #{forward.1} parent=0 // pred_fallthru
    _
  // Predicated region
  $region58: #{forward.1} parent=0 // pred_check
    _
  $region59: #{forward.1} parent=0 // pred_check_branch
    %62 = sbr.rel (0) target = $region61
  $region60: #{forward.1} parent=0 // pred_region
    _
  $region61: #{forward.1} parent=0 // pred_fallthru
    _
  // Predicated region
  $region62: #{forward.1} parent=0 // pred_check
    _
  $region63: #{forward.1} parent=0 // pred_check_branch
    %64 = sbr.rel (0) target = $region65
  $region64: #{forward.1} parent=0 // pred_region
    _
  $region65: #{forward.1} parent=0 // pred_fallthru
    _
  // Predicated region
  $region66: #{forward.1} parent=0 // pred_check
    _
  $region67: #{forward.1} parent=0 // pred_check_branch
    %66 = sbr.rel (0) target = $region69
  $region68: #{forward.1} parent=0 // pred_region
    _
  $region69: #{forward.1} parent=0 // pred_fallthru
    _
  // Predicated region
  $region70: #{forward.1} parent=0 // pred_check
    _
  $region71: #{forward.1} parent=0 // pred_check_branch
    %68 = sbr.rel (0) target = $region73
  $region72: #{forward.1} parent=0 // pred_region
    _
  $region73: #{forward.1} parent=0 // pred_fallthru
    _
  // Predicated region
  $region74: #{forward.1} parent=0 // pred_check
    _
  $region75: #{forward.1} parent=0 // pred_check_branch
    %70 = sbr.rel (0) target = $region77
  $region76: #{forward.1} parent=0 // pred_region
    _
  $region77: #{forward.1} parent=0 // pred_fallthru
    _
  // Predicated region
  $region78: #{forward.1} parent=0 // pred_check
    _
  $region79: #{forward.1} parent=0 // pred_check_branch
    %72 = sbr.rel (0) target = $region81
  $region80: #{forward.1} parent=0 // pred_region
    _
  $region81: #{forward.1} parent=0 // pred_fallthru
    _
  // Predicated region
  $region82: #{forward.1} parent=0 // pred_check
    _
  $region83: #{forward.1} parent=0 // pred_check_branch
    %74 = sbr.rel (0) target = $region85
  $region84: #{forward.1} parent=0 // pred_region
    _
  $region85: #{forward.1} parent=0 // pred_fallthru
    _
  // Predicated region
  $region86: #{forward.1} parent=0 // pred_check
    _
  $region87: #{forward.1} parent=0 // pred_check_branch
    %76 = sbr.rel (0) target = $region89
  $region88: #{forward.1} parent=0 // pred_region
    _
  $region89: #{forward.1} parent=0 // pred_fallthru
    _
  // Predicated region
  $region90: #{forward.1} parent=0 // pred_check
    _
  $region91: #{forward.1} parent=0 // pred_check_branch
    %78 = sbr.rel (0) target = $region93
  $region92: #{forward.1} parent=0 // pred_region
    _
  $region93: #{forward.1} parent=0 // pred_fallthru
    _
  // Predicated region
  $region94: #{forward.1} parent=0 // pred_check
    _
  $region95: #{forward.1} parent=0 // pred_check_branch
    %80 = sbr.rel (0) target = $region97
  $region96: #{forward.1} parent=0 // pred_region
    _
  $region97: #{forward.1} parent=0 // pred_fallthru
    _
  // Predicated region
  $region98: #{forward.1} parent=0 // pred_check
    _
  $region99: #{forward.1} parent=0 // pred_check_branch
    %82 = sbr.rel (0) target = $region101
  $region100: #{forward.1} parent=0 // pred_region
    _
  $region101: #{forward.1} parent=0 // pred_fallthru
    _
  // Predicated region
  $region102: #{forward.1} parent=0 // pred_check
    _
  $region103: #{forward.1} parent=0 // pred_check_branch
    %84 = sbr.rel (0) target = $region105
  $region104: #{forward.1} parent=0 // pred_region
    _
  $region105: #{forward.1} parent=0 // pred_fallthru
    _
  // Predicated region
  $region106: #{forward.1} parent=0 // pred_check
    _
  $region107: #{forward.1} parent=0 // pred_check_branch
    %86 = sbr.rel (0) target = $region109
  $region108: #{forward.1} parent=0 // pred_region
    _
  $region109: #{forward.1} parent=0 // pred_fallthru
    _
  // Predicated region
  $region110: #{forward.1} parent=0 // pred_check
    _
  $region111: #{forward.1} parent=0 // pred_check_branch
    %88 = sbr.rel (0) target = $region113
  $region112: #{forward.1} parent=0 // pred_region
    _
  $region113: #{forward.1} parent=0 // pred_fallthru
    _
  %v89 = vld [vmem:[%s0] sm:$0xff]
  %v90 = vld [vmem:[%s1] sm:$0xff]
  %v91 = vld [vmem:[%s2] sm:$0xff]
  %v92 = vld [vmem:[%s2 + $0x8] sm:$0xff]
  %v93 = vld [vmem:[%s2 + $0x10] sm:$0xff]
  %v94 = vld [vmem:[%s2 + $0x18] sm:$0xff]
  %v95 = vld [vmem:[%s3] sm:$0x1]
  %v96 = vld [vmem:[%s4] sm:$0x1]
  %v97 = vld [vmem:[%s5] sm:$0x1]
  %v99 = vperm.slane %v95, 0
  %vm101 = vcmask 261120
  %v103 = vsel %vm101, %v89, 0
  %105 = vmatpush.msra.mxu0 0.0
  %106 = vmatpush.msra.mxu0 0.0
  %107 = vmatpush.msra.mxu0 0.0
  %108 = vmatpush.msra.mxu0 0.0
  %109 = vmatpush.msra.mxu0 0.0
  %110 = vmatpush.msra.mxu0 0.0
  %111 = vmatpush.msra.mxu0 0.0
  %112 = vmatpush.msra.mxu0 0.0
  %113 = vmatpush.msra.mxu0 0.0
  %114 = vmatpush.msra.mxu0 0.0
  %115 = vmatpush.msra.mxu0 0.0
  %116 = vmatpush.msra.mxu0 0.0
  %117 = vmatpush.msra.mxu0 %v94
  %118 = vmatpush.msra.mxu0 %v93
  %119 = vmatpush.msra.mxu0 %v92
  %120 = vmatpush.msra.mxu0 %v91
  %121 = vmatmul.f32.gmra.mxu0 %v103
  %v122 = vpop.f32.mrf.mxu0
  %v123 = vadd.f32 %v99, %v122
  %124 = vdwg.mxu0
  %v125 = vsel %vm101, %v123, 0.0
  %126 = vadd.xlane.f32.xlu0 %v125
  %v127 = vpop.xlane.xlu0 %126
  %v128 = vmul.f32 %v123, %v123
  %v129 = vsel %vm101, %v128, 0.0
  %130 = vadd.xlane.f32.xlu0 %v129
  %v131 = vpop.xlane.xlu0 %130
  %v132 = vmul.f32 %v127, 0.03125
  %v133 = vmul.f32 %v131, 0.03125
  %v134 = vmul.f32 %v132, %v132
  %v135 = vsub.f32 %v133, %v134
  %v136 = vsub.f32 %v123, %v132
  %v137 = vadd.f32 %v135, 1e-05
  %v138 = vrsqrt.pop %v137
  %v139 = vmul.f32 %v138, %v137
  %v140 = vmul.f32 %v139, %v138
  %v141 = vmul.f32 0.5, %v140
  %v142 = vsub.f32 1.5, %v141
  %v143 = vmul.f32 %v138, %v142
  %vm144 = vweird.f32 %v137
  %vm145 = vweird.f32 %v138
  %vm146 = vmor %vm144, %vm145
  %v147 = vsel %vm146, %v138, %v143
  %v148 = vmul.f32 %v136, %v147
  %v150 = vperm.slane %v96, 0
  %v152 = vmul.f32 %v148, %v150
  %v154 = vperm.slane %v97, 0
  %v156 = vadd.f32 %v152, %v154
  %v157 = vmax.f32 %v156, 0.0
  %v158 = vld [vmem:[%s7] sm:$0x7]
  %v159 = vld [vmem:[%s6] sm:$0xff]
  %v160 = vld [vmem:[%s6 + $0x8] sm:$0xff]
  %v161 = vld [vmem:[%s6 + $0x10] sm:$0xff]
  %v162 = vld [vmem:[%s6 + $0x18] sm:$0xff]
  %v163 = vld [vmem:[%s6 + $0x20] sm:$0xff]
  %v164 = vld [vmem:[%s6 + $0x28] sm:$0xff]
  %v165 = vld [vmem:[%s6 + $0x30] sm:$0xff]
  %v166 = vld [vmem:[%s6 + $0x38] sm:$0xff]
  %167 = vmatpush.msra.mxu0 0.0
  %168 = vmatpush.msra.mxu0 0.0
  %169 = vmatpush.msra.mxu0 0.0
  %170 = vmatpush.msra.mxu0 0.0
  %171 = vmatpush.msra.mxu0 0.0
  %172 = vmatpush.msra.mxu0 0.0
  %173 = vmatpush.msra.mxu0 0.0
  %174 = vmatpush.msra.mxu0 0.0
  %175 = vmatpush.msra.mxu0 0.0
  %176 = vmatpush.msra.mxu0 0.0
  %177 = vmatpush.msra.mxu0 0.0
  %178 = vmatpush.msra.mxu0 0.0
  %179 = vmatpush.msra.mxu0 %v165
  %180 = vmatpush.msra.mxu0 %v163
  %181 = vmatpush.msra.mxu0 %v161
  %182 = vmatpush.msra.mxu0 %v159
  %183 = vmatmul.f32.gmra.mxu0 %v103
  %v184 = vpop.f32.mrf.mxu0
  %v185 = vadd.f32 0.0, %v184
  %186 = vdwg.mxu0
  %187 = vmatpush.msra.mxu0 0.0
  %188 = vmatpush.msra.mxu0 0.0
  %189 = vmatpush.msra.mxu0 0.0
  %190 = vmatpush.msra.mxu0 0.0
  %191 = vmatpush.msra.mxu0 0.0
  %192 = vmatpush.msra.mxu0 0.0
  %193 = vmatpush.msra.mxu0 0.0
  %194 = vmatpush.msra.mxu0 0.0
  %195 = vmatpush.msra.mxu0 0.0
  %196 = vmatpush.msra.mxu0 0.0
  %197 = vmatpush.msra.mxu0 0.0
  %198 = vmatpush.msra.mxu0 0.0
  %199 = vmatpush.msra.mxu0 %v166
  %200 = vmatpush.msra.mxu0 %v164
  %201 = vmatpush.msra.mxu0 %v162
  %202 = vmatpush.msra.mxu0 %v160
  %203 = vmatmul.f32.gmra.mxu0 %v103
  %v204 = vpop.f32.mrf.mxu0
  %v205 = vadd.f32 0.0, %v204
  %206 = vdwg.mxu0
  %v207 = vperm.slane %v158, 0
  %v208 = vadd.f32 %v185, %v207
  %210 = vset.pattern.permute.xlu0 0
  %211 = vperm.xlu0 %210, %v90
  %v212 = vpop.permute.xlu0 %211
  %v214 = vmul.f32 %v212, %v208
  %v215 = vadd.f32 %v214, 0.0
  %v216 = vperm.slane %v158, 1
  %218 = vrot.lane.b32.xlu0 %v216, 64
  %v219 = vpop.permute.xlu0 %218
  %v221 = vadd.f32 %v185, %v219
  %222 = vset.pattern.permute.xlu0 1
  %223 = vperm.xlu0 %222, %v90
  %v224 = vpop.permute.xlu0 %223
  %v226 = vmul.f32 %v224, %v221
  %228 = vrot.lane.b32.xlu0 %v226, 64
  %v229 = vpop.permute.xlu0 %228
  %v231 = vadd.f32 %v215, %v229
  %v232 = vperm.slane %v158, 2
  %v233 = vadd.f32 %v205, %v232
  %234 = vset.pattern.permute.xlu0 2
  %235 = vperm.xlu0 %234, %v90
  %v236 = vpop.permute.xlu0 %235
  %v238 = vmul.f32 %v236, %v233
  %v239 = vadd.f32 %v231, %v238
  %v240 = vld [vmem:[%s8] sm:$0xff]
  %v241 = vld [vmem:[%s8 + $0x8] sm:$0xff]
  %v242 = vld [vmem:[%s8 + $0x10] sm:$0xff]
  %v243 = vld [vmem:[%s8 + $0x18] sm:$0xff]
  %v244 = vld [vmem:[%s8 + $0x20] sm:$0xff]
  %v245 = vld [vmem:[%s8 + $0x28] sm:$0xff]
  %v246 = vld [vmem:[%s8 + $0x30] sm:$0xff]
  %v247 = vld [vmem:[%s8 + $0x38] sm:$0xff]
  %v248 = vld [vmem:[%s9] sm:$0x1]
  %v249 = vld [vmem:[%s10] sm:$0x1]
  %v250 = vld [vmem:[%s11] sm:$0x1]
  %v252 = vperm.slane %v248, 0
  %vm254 = vcmask 523264
  %v256 = vsel %vm254, %v239, 0
  %258 = vmatpush.msra.mxu0 0.0
  %259 = vmatpush.msra.mxu0 0.0
  %260 = vmatpush.msra.mxu0 0.0
  %261 = vmatpush.msra.mxu0 0.0
  %262 = vmatpush.msra.mxu0 0.0
  %263 = vmatpush.msra.mxu0 0.0
  %264 = vmatpush.msra.mxu0 0.0
  %265 = vmatpush.msra.mxu0 0.0
  %266 = vmatpush.msra.mxu0 %v247
  %267 = vmatpush.msra.mxu0 %v246
  %268 = vmatpush.msra.mxu0 %v245
  %269 = vmatpush.msra.mxu0 %v244
  %270 = vmatpush.msra.mxu0 %v243
  %271 = vmatpush.msra.mxu0 %v242
  %272 = vmatpush.msra.mxu0 %v241
  %273 = vmatpush.msra.mxu0 %v240
  %274 = vmatmul.f32.gmra.mxu0 %v256
  %v275 = vpop.f32.mrf.mxu0
  %v276 = vadd.f32 %v252, %v275
  %277 = vdwg.mxu0
  %v278 = vsel %vm101, %v276, 0.0
  %279 = vadd.xlane.f32.xlu0 %v278
  %v280 = vpop.xlane.xlu0 %279
  %v281 = vmul.f32 %v276, %v276
  %v282 = vsel %vm101, %v281, 0.0
  %283 = vadd.xlane.f32.xlu0 %v282
  %v284 = vpop.xlane.xlu0 %283
  %v285 = vmul.f32 %v280, 0.03125
  %v286 = vmul.f32 %v284, 0.03125
  %v287 = vmul.f32 %v285, %v285
  %v288 = vsub.f32 %v286, %v287
  %v289 = vsub.f32 %v276, %v285
  %v290 = vadd.f32 %v288, 1e-05
  %v291 = vrsqrt.pop %v290
  %v292 = vmul.f32 %v291, %v290
  %v293 = vmul.f32 %v292, %v291
  %v294 = vmul.f32 0.5, %v293
  %v295 = vsub.f32 1.5, %v294
  %v296 = vmul.f32 %v291, %v295
  %vm297 = vweird.f32 %v290
  %vm298 = vweird.f32 %v291
  %vm299 = vmor %vm297, %vm298
  %v300 = vsel %vm299, %v291, %v296
  %v301 = vmul.f32 %v289, %v300
  %v303 = vperm.slane %v249, 0
  %v305 = vmul.f32 %v301, %v303
  %v307 = vperm.slane %v250, 0
  %v309 = vadd.f32 %v305, %v307
  %v310 = vmax.f32 %v309, 0.0
  %v311 = vadd.f32 %v310, %v157
  %v312 = vld [vmem:[%s12] sm:$0xff]
  %v313 = vld [vmem:[%s12 + $0x8] sm:$0xff]
  %v314 = vld [vmem:[%s12 + $0x10] sm:$0xff]
  %v315 = vld [vmem:[%s12 + $0x18] sm:$0xff]
  %v316 = vld [vmem:[%s12 + $0x20] sm:$0xff]
  %v317 = vld [vmem:[%s12 + $0x28] sm:$0xff]
  %v318 = vld [vmem:[%s12 + $0x30] sm:$0xff]
  %v319 = vld [vmem:[%s12 + $0x38] sm:$0xff]
  %v320 = vld [vmem:[%s12 + $0x40] sm:$0xff]
  %v321 = vld [vmem:[%s12 + $0x48] sm:$0xff]
  %v322 = vld [vmem:[%s12 + $0x50] sm:$0xff]
  %v323 = vld [vmem:[%s12 + $0x58] sm:$0xff]
  %v324 = vld [vmem:[%s13] sm:$0x7]
  %v326 = vperm.slane %v324, 0
  %v327 = vperm.slane %v324, 1
  %v328 = vperm.slane %v324, 2
  %v333 = vsel %vm101, %v311, 0
  %335 = vmatpush.msra.mxu0 0.0
  %336 = vmatpush.msra.mxu0 0.0
  %337 = vmatpush.msra.mxu0 0.0
  %338 = vmatpush.msra.mxu0 0.0
  %339 = vmatpush.msra.mxu0 0.0
  %340 = vmatpush.msra.mxu0 0.0
  %341 = vmatpush.msra.mxu0 0.0
  %342 = vmatpush.msra.mxu0 0.0
  %343 = vmatpush.msra.mxu0 0.0
  %344 = vmatpush.msra.mxu0 0.0
  %345 = vmatpush.msra.mxu0 0.0
  %346 = vmatpush.msra.mxu0 0.0
  %347 = vmatpush.msra.mxu0 %v321
  %348 = vmatpush.msra.mxu0 %v318
  %349 = vmatpush.msra.mxu0 %v315
  %350 = vmatpush.msra.mxu0 %v312
  %351 = vmatmul.f32.gmra.mxu0 %v333
  %v352 = vpop.f32.mrf.mxu0
  %v353 = vadd.f32 %v326, %v352
  %354 = vdwg.mxu0
  %355 = vmatpush.msra.mxu0 0.0
  %356 = vmatpush.msra.mxu0 0.0
  %357 = vmatpush.msra.mxu0 0.0
  %358 = vmatpush.msra.mxu0 0.0
  %359 = vmatpush.msra.mxu0 0.0
  %360 = vmatpush.msra.mxu0 0.0
  %361 = vmatpush.msra.mxu0 0.0
  %362 = vmatpush.msra.mxu0 0.0
  %363 = vmatpush.msra.mxu0 0.0
  %364 = vmatpush.msra.mxu0 0.0
  %365 = vmatpush.msra.mxu0 0.0
  %366 = vmatpush.msra.mxu0 0.0
  %367 = vmatpush.msra.mxu0 %v322
  %368 = vmatpush.msra.mxu0 %v319
  %369 = vmatpush.msra.mxu0 %v316
  %370 = vmatpush.msra.mxu0 %v313
  %371 = vmatmul.f32.gmra.mxu0 %v333
  %v372 = vpop.f32.mrf.mxu0
  %v373 = vadd.f32 %v327, %v372
  %374 = vdwg.mxu0
  %375 = vmatpush.msra.mxu0 0.0
  %376 = vmatpush.msra.mxu0 0.0
  %377 = vmatpush.msra.mxu0 0.0
  %378 = vmatpush.msra.mxu0 0.0
  %379 = vmatpush.msra.mxu0 0.0
  %380 = vmatpush.msra.mxu0 0.0
  %381 = vmatpush.msra.mxu0 0.0
  %382 = vmatpush.msra.mxu0 0.0
  %383 = vmatpush.msra.mxu0 0.0
  %384 = vmatpush.msra.mxu0 0.0
  %385 = vmatpush.msra.mxu0 0.0
  %386 = vmatpush.msra.mxu0 0.0
  %387 = vmatpush.msra.mxu0 %v323
  %388 = vmatpush.msra.mxu0 %v320
  %389 = vmatpush.msra.mxu0 %v317
  %390 = vmatpush.msra.mxu0 %v314
  %391 = vmatmul.f32.gmra.mxu0 %v333
  %v392 = vpop.f32.mrf.mxu0
  %v393 = vadd.f32 %v328, %v392
  %394 = vdwg.mxu0
  %v395 = vsel %vm101, %v353, 0.0
  %396 = vadd.xlane.f32.xlu0 %v395
  %v397 = vpop.xlane.xlu0 %396
  %v398 = vmul.f32 %v353, %v353
  %v399 = vsel %vm101, %v398, 0.0
  %400 = vadd.xlane.f32.xlu0 %v399
  %v401 = vpop.xlane.xlu0 %400
  %v402 = vmul.f32 %v397, 0.03125
  %v403 = vmul.f32 %v401, 0.03125
  %v404 = vmul.f32 %v402, %v402
  %v405 = vsub.f32 %v403, %v404
  %v406 = vsub.f32 %v353, %v402
  %v407 = vadd.f32 %v405, 1e-05
  %v408 = vrsqrt.pop %v407
  %v409 = vmul.f32 %v408, %v407
  %v410 = vmul.f32 %v409, %v408
  %v411 = vmul.f32 0.5, %v410
  %v412 = vsub.f32 1.5, %v411
  %v413 = vmul.f32 %v408, %v412
  %vm414 = vweird.f32 %v407
  %vm415 = vweird.f32 %v408
  %vm416 = vmor %vm414, %vm415
  %v417 = vsel %vm416, %v408, %v413
  %v418 = vmul.f32 %v406, %v417
  %420 = vrot.lane.b32.xlu0 %v353, 96
  %v421 = vpop.permute.xlu0 %420
  %v423 = vsel %vm101, %v421, 0.0
  %424 = vadd.xlane.f32.xlu0 %v423
  %v425 = vpop.xlane.xlu0 %424
  %427 = vrot.lane.b32.xlu0 %v398, 96
  %v428 = vpop.permute.xlu0 %427
  %v430 = vsel %vm101, %v428, 0.0
  %431 = vadd.xlane.f32.xlu0 %v430
  %v432 = vpop.xlane.xlu0 %431
  %v433 = vmul.f32 %v425, 0.03125
  %v434 = vmul.f32 %v432, 0.03125
  %v435 = vmul.f32 %v433, %v433
  %v436 = vsub.f32 %v434, %v435
  %v437 = vsub.f32 %v353, %v433
  %v438 = vadd.f32 %v436, 1e-05
  %v439 = vrsqrt.pop %v438
  %v440 = vmul.f32 %v439, %v438
  %v441 = vmul.f32 %v440, %v439
  %v442 = vmul.f32 0.5, %v441
  %v443 = vsub.f32 1.5, %v442
  %v444 = vmul.f32 %v439, %v443
  %vm445 = vweird.f32 %v438
  %vm446 = vweird.f32 %v439
  %vm447 = vmor %vm445, %vm446
  %v448 = vsel %vm447, %v439, %v444
  %v449 = vmul.f32 %v437, %v448
  %450 = vrot.lane.b32.xlu0 %v353, 64
  %v451 = vpop.permute.xlu0 %450
  %v453 = vsel %vm101, %v451, 0.0
  %454 = vadd.xlane.f32.xlu0 %v453
  %v455 = vpop.xlane.xlu0 %454
  %456 = vrot.lane.b32.xlu0 %v398, 64
  %v457 = vpop.permute.xlu0 %456
  %v459 = vsel %vm101, %v457, 0.0
  %460 = vadd.xlane.f32.xlu0 %v459
  %v461 = vpop.xlane.xlu0 %460
  %v462 = vmul.f32 %v455, 0.03125
  %v463 = vmul.f32 %v461, 0.03125
  %v464 = vmul.f32 %v462, %v462
  %v465 = vsub.f32 %v463, %v464
  %v466 = vsub.f32 %v353, %v462
  %v467 = vadd.f32 %v465, 1e-05
  %v468 = vrsqrt.pop %v467
  %v469 = vmul.f32 %v468, %v467
  %v470 = vmul.f32 %v469, %v468
  %v471 = vmul.f32 0.5, %v470
  %v472 = vsub.f32 1.5, %v471
  %v473 = vmul.f32 %v468, %v472
  %vm474 = vweird.f32 %v467
  %vm475 = vweird.f32 %v468
  %vm476 = vmor %vm474, %vm475
  %v477 = vsel %vm476, %v468, %v473
  %v478 = vmul.f32 %v466, %v477
  %479 = vrot.lane.b32.xlu0 %v353, 32
  %v480 = vpop.permute.xlu0 %479
  %v482 = vsel %vm101, %v480, 0.0
  %483 = vadd.xlane.f32.xlu0 %v482
  %v484 = vpop.xlane.xlu0 %483
  %485 = vrot.lane.b32.xlu0 %v398, 32
  %v486 = vpop.permute.xlu0 %485
  %v488 = vsel %vm101, %v486, 0.0
  %489 = vadd.xlane.f32.xlu0 %v488
  %v490 = vpop.xlane.xlu0 %489
  %v491 = vmul.f32 %v484, 0.03125
  %v492 = vmul.f32 %v490, 0.03125
  %v493 = vmul.f32 %v491, %v491
  %v494 = vsub.f32 %v492, %v493
  %v495 = vsub.f32 %v353, %v491
  %v496 = vadd.f32 %v494, 1e-05
  %v497 = vrsqrt.pop %v496
  %v498 = vmul.f32 %v497, %v496
  %v499 = vmul.f32 %v498, %v497
  %v500 = vmul.f32 0.5, %v499
  %v501 = vsub.f32 1.5, %v500
  %v502 = vmul.f32 %v497, %v501
  %vm503 = vweird.f32 %v496
  %vm504 = vweird.f32 %v497
  %vm505 = vmor %vm503, %vm504
  %v506 = vsel %vm505, %v497, %v502
  %v507 = vmul.f32 %v495, %v506
  %v508 = vsel %vm101, %v373, 0.0
  %509 = vadd.xlane.f32.xlu0 %v508
  %v510 = vpop.xlane.xlu0 %509
  %v511 = vmul.f32 %v373, %v373
  %v512 = vsel %vm101, %v511, 0.0
  %513 = vadd.xlane.f32.xlu0 %v512
  %v514 = vpop.xlane.xlu0 %513
  %v515 = vmul.f32 %v510, 0.03125
  %v516 = vmul.f32 %v514, 0.03125
  %v517 = vmul.f32 %v515, %v515
  %v518 = vsub.f32 %v516, %v517
  %v519 = vsub.f32 %v373, %v515
  %v520 = vadd.f32 %v518, 1e-05
  %v521 = vrsqrt.pop %v520
  %v522 = vmul.f32 %v521, %v520
  %v523 = vmul.f32 %v522, %v521
  %v524 = vmul.f32 0.5, %v523
  %v525 = vsub.f32 1.5, %v524
  %v526 = vmul.f32 %v521, %v525
  %vm527 = vweird.f32 %v520
  %vm528 = vweird.f32 %v521
  %vm529 = vmor %vm527, %vm528
  %v530 = vsel %vm529, %v521, %v526
  %v531 = vmul.f32 %v519, %v530
  %533 = vrot.lane.b32.xlu0 %v373, 96
  %v534 = vpop.permute.xlu0 %533
  %v536 = vsel %vm101, %v534, 0.0
  %537 = vadd.xlane.f32.xlu0 %v536
  %v538 = vpop.xlane.xlu0 %537
  %540 = vrot.lane.b32.xlu0 %v511, 96
  %v541 = vpop.permute.xlu0 %540
  %v543 = vsel %vm101, %v541, 0.0
  %544 = vadd.xlane.f32.xlu0 %v543
  %v545 = vpop.xlane.xlu0 %544
  %v546 = vmul.f32 %v538, 0.03125
  %v547 = vmul.f32 %v545, 0.03125
  %v548 = vmul.f32 %v546, %v546
  %v549 = vsub.f32 %v547, %v548
  %v550 = vsub.f32 %v373, %v546
  %v551 = vadd.f32 %v549, 1e-05
  %v552 = vrsqrt.pop %v551
  %v553 = vmul.f32 %v552, %v551
  %v554 = vmul.f32 %v553, %v552
  %v555 = vmul.f32 0.5, %v554
  %v556 = vsub.f32 1.5, %v555
  %v557 = vmul.f32 %v552, %v556
  %vm558 = vweird.f32 %v551
  %vm559 = vweird.f32 %v552
  %vm560 = vmor %vm558, %vm559
  %v561 = vsel %vm560, %v552, %v557
  %v562 = vmul.f32 %v550, %v561
  %563 = vrot.lane.b32.xlu0 %v373, 64
  %v564 = vpop.permute.xlu0 %563
  %v566 = vsel %vm101, %v564, 0.0
  %567 = vadd.xlane.f32.xlu0 %v566
  %v568 = vpop.xlane.xlu0 %567
  %569 = vrot.lane.b32.xlu0 %v511, 64
  %v570 = vpop.permute.xlu0 %569
  %v572 = vsel %vm101, %v570, 0.0
  %573 = vadd.xlane.f32.xlu0 %v572
  %v574 = vpop.xlane.xlu0 %573
  %v575 = vmul.f32 %v568, 0.03125
  %v576 = vmul.f32 %v574, 0.03125
  %v577 = vmul.f32 %v575, %v575
  %v578 = vsub.f32 %v576, %v577
  %v579 = vsub.f32 %v373, %v575
  %v580 = vadd.f32 %v578, 1e-05
  %v581 = vrsqrt.pop %v580
  %v582 = vmul.f32 %v581, %v580
  %v583 = vmul.f32 %v582, %v581
  %v584 = vmul.f32 0.5, %v583
  %v585 = vsub.f32 1.5, %v584
  %v586 = vmul.f32 %v581, %v585
  %vm587 = vweird.f32 %v580
  %vm588 = vweird.f32 %v581
  %vm589 = vmor %vm587, %vm588
  %v590 = vsel %vm589, %v581, %v586
  %v591 = vmul.f32 %v579, %v590
  %592 = vrot.lane.b32.xlu0 %v373, 32
  %v593 = vpop.permute.xlu0 %592
  %v595 = vsel %vm101, %v593, 0.0
  %596 = vadd.xlane.f32.xlu0 %v595
  %v597 = vpop.xlane.xlu0 %596
  %598 = vrot.lane.b32.xlu0 %v511, 32
  %v599 = vpop.permute.xlu0 %598
  %v601 = vsel %vm101, %v599, 0.0
  %602 = vadd.xlane.f32.xlu0 %v601
  %v603 = vpop.xlane.xlu0 %602
  %v604 = vmul.f32 %v597, 0.03125
  %v605 = vmul.f32 %v603, 0.03125
  %v606 = vmul.f32 %v604, %v604
  %v607 = vsub.f32 %v605, %v606
  %v608 = vsub.f32 %v373, %v604
  %v609 = vadd.f32 %v607, 1e-05
  %v610 = vrsqrt.pop %v609
  %v611 = vmul.f32 %v610, %v609
  %v612 = vmul.f32 %v611, %v610
  %v613 = vmul.f32 0.5, %v612
  %v614 = vsub.f32 1.5, %v613
  %v615 = vmul.f32 %v610, %v614
  %vm616 = vweird.f32 %v609
  %vm617 = vweird.f32 %v610
  %vm618 = vmor %vm616, %vm617
  %v619 = vsel %vm618, %v610, %v615
  %v620 = vmul.f32 %v608, %v619
  %v621 = vsel %vm101, %v393, 0.0
  %622 = vadd.xlane.f32.xlu0 %v621
  %v623 = vpop.xlane.xlu0 %622
  %v624 = vmul.f32 %v393, %v393
  %v625 = vsel %vm101, %v624, 0.0
  %626 = vadd.xlane.f32.xlu0 %v625
  %v627 = vpop.xlane.xlu0 %626
  %v628 = vmul.f32 %v623, 0.03125
  %v629 = vmul.f32 %v627, 0.03125
  %v630 = vmul.f32 %v628, %v628
  %v631 = vsub.f32 %v629, %v630
  %v632 = vsub.f32 %v393, %v628
  %v633 = vadd.f32 %v631, 1e-05
  %v634 = vrsqrt.pop %v633
  %v635 = vmul.f32 %v634, %v633
  %v636 = vmul.f32 %v635, %v634
  %v637 = vmul.f32 0.5, %v636
  %v638 = vsub.f32 1.5, %v637
  %v639 = vmul.f32 %v634, %v638
  %vm640 = vweird.f32 %v633
  %vm641 = vweird.f32 %v634
  %vm642 = vmor %vm640, %vm641
  %v643 = vsel %vm642, %v634, %v639
  %v644 = vmul.f32 %v632, %v643
  %v645 = vsel %vm101, %v418, %v449
  %v646 = vsel %vm254, %v645, %v478
  %vm647 = vcmask 785408
  %v648 = vsel %vm647, %v646, %v507
  %v649 = vsel %vm101, %v531, %v562
  %v650 = vsel %vm254, %v649, %v591
  %v651 = vsel %vm647, %v650, %v620
  %v652 = vld [vmem:[%s14] sm:$0x7]
  %v654 = vperm.slane %v652, 0
  %v655 = vperm.slane %v652, 1
  %v656 = vperm.slane %v652, 2
  %v660 = vmul.f32 %v648, %v654
  %v661 = vmul.f32 %v651, %v655
  %v662 = vmul.f32 %v644, %v656
  %v663 = vld [vmem:[%s15] sm:$0x7]
  %v665 = vperm.slane %v663, 0
  %v666 = vperm.slane %v663, 1
  %v667 = vperm.slane %v663, 2
  %v671 = vadd.f32 %v660, %v665
  %v672 = vadd.f32 %v661, %v666
  %v673 = vadd.f32 %v662, %v667
  %v674 = vmax.f32 %v671, 0.0
  %v675 = vmax.f32 %v672, 0.0
  %v676 = vmax.f32 %v673, 0.0
  %v677 = vld [vmem:[%s16] sm:$0xff]
  %v678 = vld [vmem:[%s16 + $0x8] sm:$0xff]
  %v679 = vld [vmem:[%s16 + $0x10] sm:$0xff]
  %v680 = vld [vmem:[%s16 + $0x18] sm:$0xff]
  %v681 = vld [vmem:[%s16 + $0x20] sm:$0xff]
  %v682 = vld [vmem:[%s16 + $0x28] sm:$0xff]
  %v683 = vld [vmem:[%s16 + $0x30] sm:$0xff]
  %v684 = vld [vmem:[%s16 + $0x38] sm:$0xff]
  %v685 = vld [vmem:[%s16 + $0x40] sm:$0xff]
  %v686 = vld [vmem:[%s16 + $0x48] sm:$0xff]
  %v687 = vld [vmem:[%s16 + $0x50] sm:$0xff]
  %v688 = vld [vmem:[%s16 + $0x58] sm:$0xff]
  %v689 = vld [vmem:[%s16 + $0x60] sm:$0xff]
  %v690 = vld [vmem:[%s16 + $0x68] sm:$0xff]
  %v691 = vld [vmem:[%s16 + $0x70] sm:$0xff]
  %v692 = vld [vmem:[%s16 + $0x78] sm:$0xff]
  %v693 = vld [vmem:[%s16 + $0x80] sm:$0xff]
  %v694 = vld [vmem:[%s16 + $0x88] sm:$0xff]
  %v695 = vld [vmem:[%s16 + $0x90] sm:$0xff]
  %v696 = vld [vmem:[%s16 + $0x98] sm:$0xff]
  %v697 = vld [vmem:[%s16 + $0xa0] sm:$0xff]
  %v698 = vld [vmem:[%s16 + $0xa8] sm:$0xff]
  %v699 = vld [vmem:[%s16 + $0xb0] sm:$0xff]
  %v700 = vld [vmem:[%s16 + $0xb8] sm:$0xff]
  %v701 = vld [vmem:[%s16 + $0xc0] sm:$0xff]
  %v702 = vld [vmem:[%s16 + $0xc8] sm:$0xff]
  %v703 = vld [vmem:[%s16 + $0xd0] sm:$0xff]
  %v704 = vld [vmem:[%s16 + $0xd8] sm:$0xff]
  %v705 = vld [vmem:[%s16 + $0xe0] sm:$0xff]
  %v706 = vld [vmem:[%s16 + $0xe8] sm:$0xff]
  %v707 = vld [vmem:[%s16 + $0xf0] sm:$0xff]
  %v708 = vld [vmem:[%s16 + $0xf8] sm:$0xff]
  %v709 = vld [vmem:[%s16 + $0x100] sm:$0xff]
  %v710 = vld [vmem:[%s16 + $0x108] sm:$0xff]
  %v711 = vld [vmem:[%s16 + $0x110] sm:$0xff]
  %v712 = vld [vmem:[%s16 + $0x118] sm:$0xff]
  %v713 = vld [vmem:[%s16 + $0x120] sm:$0xff]
  %v714 = vld [vmem:[%s16 + $0x128] sm:$0xff]
  %v715 = vld [vmem:[%s16 + $0x130] sm:$0xff]
  %v716 = vld [vmem:[%s16 + $0x138] sm:$0xff]
  %v717 = vld [vmem:[%s16 + $0x140] sm:$0xff]
  %v718 = vld [vmem:[%s16 + $0x148] sm:$0xff]
  %v719 = vld [vmem:[%s16 + $0x150] sm:$0xff]
  %v720 = vld [vmem:[%s16 + $0x158] sm:$0xff]
  %v721 = vld [vmem:[%s16 + $0x160] sm:$0xff]
  %v722 = vld [vmem:[%s16 + $0x168] sm:$0xff]
  %v723 = vld [vmem:[%s16 + $0x170] sm:$0xff]
  %v724 = vld [vmem:[%s16 + $0x178] sm:$0xff]
  %v725 = vld [vmem:[%s16 + $0x180] sm:$0xff]
  %v726 = vld [vmem:[%s16 + $0x188] sm:$0xff]
  %v727 = vld [vmem:[%s16 + $0x190] sm:$0xff]
  %v728 = vld [vmem:[%s16 + $0x198] sm:$0xff]
  %v729 = vld [vmem:[%s16 + $0x1a0] sm:$0xff]
  %v730 = vld [vmem:[%s16 + $0x1a8] sm:$0xff]
  %v731 = vld [vmem:[%s16 + $0x1b0] sm:$0xff]
  %v732 = vld [vmem:[%s16 + $0x1b8] sm:$0xff]
  %v733 = vld [vmem:[%s16 + $0x1c0] sm:$0xff]
  %v734 = vld [vmem:[%s16 + $0x1c8] sm:$0xff]
  %v735 = vld [vmem:[%s16 + $0x1d0] sm:$0xff]
  %v736 = vld [vmem:[%s16 + $0x1d8] sm:$0xff]
  %v737 = vld [vmem:[%s16 + $0x1e0] sm:$0xff]
  %v738 = vld [vmem:[%s16 + $0x1e8] sm:$0xff]
  %v739 = vld [vmem:[%s16 + $0x1f0] sm:$0xff]
  %v740 = vld [vmem:[%s16 + $0x1f8] sm:$0xff]
  %v741 = vld [vmem:[%s16 + $0x200] sm:$0xff]
  %v742 = vld [vmem:[%s16 + $0x208] sm:$0xff]
  %v743 = vld [vmem:[%s16 + $0x210] sm:$0xff]
  %v744 = vld [vmem:[%s16 + $0x218] sm:$0xff]
  %v745 = vld [vmem:[%s16 + $0x220] sm:$0xff]
  %v746 = vld [vmem:[%s16 + $0x228] sm:$0xff]
  %v747 = vld [vmem:[%s16 + $0x230] sm:$0xff]
  %v748 = vld [vmem:[%s16 + $0x238] sm:$0xff]
  %v749 = vld [vmem:[%s17] sm:$0x3]
  %v751 = vperm.slane %v749, 0
  %v752 = vperm.slane %v749, 1
  %v756 = vsel %vm101, %v676, 0
  %758 = vmatpush.msra.mxu0 %v707
  %759 = vmatpush.msra.mxu0 %v705
  %760 = vmatpush.msra.mxu0 %v703
  %761 = vmatpush.msra.mxu0 %v701
  %762 = vmatpush.msra.mxu0 %v699
  %763 = vmatpush.msra.mxu0 %v697
  %764 = vmatpush.msra.mxu0 %v695
  %765 = vmatpush.msra.mxu0 %v693
  %766 = vmatpush.msra.mxu0 %v691
  %767 = vmatpush.msra.mxu0 %v689
  %768 = vmatpush.msra.mxu0 %v687
  %769 = vmatpush.msra.mxu0 %v685
  %770 = vmatpush.msra.mxu0 %v683
  %771 = vmatpush.msra.mxu0 %v681
  %772 = vmatpush.msra.mxu0 %v679
  %773 = vmatpush.msra.mxu0 %v677
  %774 = vmatmul.f32.gmra.mxu0 %v674
  %v775 = vpop.f32.mrf.mxu0
  %v776 = vadd.f32 %v751, %v775
  %777 = vdwg.mxu0
  %778 = vmatpush.msra.mxu0 %v739
  %779 = vmatpush.msra.mxu0 %v737
  %780 = vmatpush.msra.mxu0 %v735
  %781 = vmatpush.msra.mxu0 %v733
  %782 = vmatpush.msra.mxu0 %v731
  %783 = vmatpush.msra.mxu0 %v729
  %784 = vmatpush.msra.mxu0 %v727
  %785 = vmatpush.msra.mxu0 %v725
  %786 = vmatpush.msra.mxu0 %v723
  %787 = vmatpush.msra.mxu0 %v721
  %788 = vmatpush.msra.mxu0 %v719
  %789 = vmatpush.msra.mxu0 %v717
  %790 = vmatpush.msra.mxu0 %v715
  %791 = vmatpush.msra.mxu0 %v713
  %792 = vmatpush.msra.mxu0 %v711
  %793 = vmatpush.msra.mxu0 %v709
  %794 = vmatmul.f32.gmra.mxu0 %v675
  %v795 = vpop.f32.mrf.mxu0
  %v796 = vadd.f32 %v776, %v795
  %797 = vdwg.mxu0
  %798 = vmatpush.msra.mxu0 0.0
  %799 = vmatpush.msra.mxu0 0.0
  %800 = vmatpush.msra.mxu0 0.0
  %801 = vmatpush.msra.mxu0 0.0
  %802 = vmatpush.msra.mxu0 0.0
  %803 = vmatpush.msra.mxu0 0.0
  %804 = vmatpush.msra.mxu0 0.0
  %805 = vmatpush.msra.mxu0 0.0
  %806 = vmatpush.msra.mxu0 0.0
  %807 = vmatpush.msra.mxu0 0.0
  %808 = vmatpush.msra.mxu0 0.0
  %809 = vmatpush.msra.mxu0 0.0
  %810 = vmatpush.msra.mxu0 %v747
  %811 = vmatpush.msra.mxu0 %v745
  %812 = vmatpush.msra.mxu0 %v743
  %813 = vmatpush.msra.mxu0 %v741
  %814 = vmatmul.f32.gmra.mxu0 %v756
  %v815 = vpop.f32.mrf.mxu0
  %v816 = vadd.f32 %v796, %v815
  %817 = vdwg.mxu0
  %818 = vmatpush.msra.mxu0 %v708
  %819 = vmatpush.msra.mxu0 %v706
  %820 = vmatpush.msra.mxu0 %v704
  %821 = vmatpush.msra.mxu0 %v702
  %822 = vmatpush.msra.mxu0 %v700
  %823 = vmatpush.msra.mxu0 %v698
  %824 = vmatpush.msra.mxu0 %v696
  %825 = vmatpush.msra.mxu0 %v694
  %826 = vmatpush.msra.mxu0 %v692
  %827 = vmatpush.msra.mxu0 %v690
  %828 = vmatpush.msra.mxu0 %v688
  %829 = vmatpush.msra.mxu0 %v686
  %830 = vmatpush.msra.mxu0 %v684
  %831 = vmatpush.msra.mxu0 %v682
  %832 = vmatpush.msra.mxu0 %v680
  %833 = vmatpush.msra.mxu0 %v678
  %834 = vmatmul.f32.gmra.mxu0 %v674
  %v835 = vpop.f32.mrf.mxu0
  %v836 = vadd.f32 %v752, %v835
  %837 = vdwg.mxu0
  %838 = vmatpush.msra.mxu0 %v740
  %839 = vmatpush.msra.mxu0 %v738
  %840 = vmatpush.msra.mxu0 %v736
  %841 = vmatpush.msra.mxu0 %v734
  %842 = vmatpush.msra.mxu0 %v732
  %843 = vmatpush.msra.mxu0 %v730
  %844 = vmatpush.msra.mxu0 %v728
  %845 = vmatpush.msra.mxu0 %v726
  %846 = vmatpush.msra.mxu0 %v724
  %847 = vmatpush.msra.mxu0 %v722
  %848 = vmatpush.msra.mxu0 %v720
  %849 = vmatpush.msra.mxu0 %v718
  %850 = vmatpush.msra.mxu0 %v716
  %851 = vmatpush.msra.mxu0 %v714
  %852 = vmatpush.msra.mxu0 %v712
  %853 = vmatpush.msra.mxu0 %v710
  %854 = vmatmul.f32.gmra.mxu0 %v675
  %v855 = vpop.f32.mrf.mxu0
  %v856 = vadd.f32 %v836, %v855
  %857 = vdwg.mxu0
  %858 = vmatpush.msra.mxu0 0.0
  %859 = vmatpush.msra.mxu0 0.0
  %860 = vmatpush.msra.mxu0 0.0
  %861 = vmatpush.msra.mxu0 0.0
  %862 = vmatpush.msra.mxu0 0.0
  %863 = vmatpush.msra.mxu0 0.0
  %864 = vmatpush.msra.mxu0 0.0
  %865 = vmatpush.msra.mxu0 0.0
  %866 = vmatpush.msra.mxu0 0.0
  %867 = vmatpush.msra.mxu0 0.0
  %868 = vmatpush.msra.mxu0 0.0
  %869 = vmatpush.msra.mxu0 0.0
  %870 = vmatpush.msra.mxu0 %v748
  %871 = vmatpush.msra.mxu0 %v746
  %872 = vmatpush.msra.mxu0 %v744
  %873 = vmatpush.msra.mxu0 %v742
  %874 = vmatmul.f32.gmra.mxu0 %v756
  %v875 = vpop.f32.mrf.mxu0
  %v876 = vadd.f32 %v856, %v875
  %877 = vdwg.mxu0
  %vm878 = vcmask 130048
  %v879 = vsel %vm878, %v816, 0.0
  %880 = vadd.xlane.f32.xlu0 %v879
  %v881 = vpop.xlane.xlu0 %880
  %v882 = vmul.f32 %v816, %v816
  %v883 = vsel %vm878, %v882, 0.0
  %884 = vadd.xlane.f32.xlu0 %v883
  %v885 = vpop.xlane.xlu0 %884
  %v886 = vmul.f32 %v881, 0.0625
  %v887 = vmul.f32 %v885, 0.0625
  %v888 = vmul.f32 %v886, %v886
  %v889 = vsub.f32 %v887, %v888
  %v890 = vsub.f32 %v816, %v886
  %v891 = vadd.f32 %v889, 1e-05
  %v892 = vrsqrt.pop %v891
  %v893 = vmul.f32 %v892, %v891
  %v894 = vmul.f32 %v893, %v892
  %v895 = vmul.f32 0.5, %v894
  %v896 = vsub.f32 1.5, %v895
  %v897 = vmul.f32 %v892, %v896
  %vm898 = vweird.f32 %v891
  %vm899 = vweird.f32 %v892
  %vm900 = vmor %vm898, %vm899
  %v901 = vsel %vm900, %v892, %v897
  %v902 = vmul.f32 %v890, %v901
  %904 = vrot.lane.b32.xlu0 %v816, 112
  %v905 = vpop.permute.xlu0 %904
  %v907 = vsel %vm878, %v905, 0.0
  %908 = vadd.xlane.f32.xlu0 %v907
  %v909 = vpop.xlane.xlu0 %908
  %911 = vrot.lane.b32.xlu0 %v882, 112
  %v912 = vpop.permute.xlu0 %911
  %v914 = vsel %vm878, %v912, 0.0
  %915 = vadd.xlane.f32.xlu0 %v914
  %v916 = vpop.xlane.xlu0 %915
  %v917 = vmul.f32 %v909, 0.0625
  %v918 = vmul.f32 %v916, 0.0625
  %v919 = vmul.f32 %v917, %v917
  %v920 = vsub.f32 %v918, %v919
  %v921 = vsub.f32 %v816, %v917
  %v922 = vadd.f32 %v920, 1e-05
  %v923 = vrsqrt.pop %v922
  %v924 = vmul.f32 %v923, %v922
  %v925 = vmul.f32 %v924, %v923
  %v926 = vmul.f32 0.5, %v925
  %v927 = vsub.f32 1.5, %v926
  %v928 = vmul.f32 %v923, %v927
  %vm929 = vweird.f32 %v922
  %vm930 = vweird.f32 %v923
  %vm931 = vmor %vm929, %vm930
  %v932 = vsel %vm931, %v923, %v928
  %v933 = vmul.f32 %v921, %v932
  %934 = vrot.lane.b32.xlu0 %v816, 96
  %v935 = vpop.permute.xlu0 %934
  %v937 = vsel %vm878, %v935, 0.0
  %938 = vadd.xlane.f32.xlu0 %v937
  %v939 = vpop.xlane.xlu0 %938
  %940 = vrot.lane.b32.xlu0 %v882, 96
  %v941 = vpop.permute.xlu0 %940
  %v943 = vsel %vm878, %v941, 0.0
  %944 = vadd.xlane.f32.xlu0 %v943
  %v945 = vpop.xlane.xlu0 %944
  %v946 = vmul.f32 %v939, 0.0625
  %v947 = vmul.f32 %v945, 0.0625
  %v948 = vmul.f32 %v946, %v946
  %v949 = vsub.f32 %v947, %v948
  %v950 = vsub.f32 %v816, %v946
  %v951 = vadd.f32 %v949, 1e-05
  %v952 = vrsqrt.pop %v951
  %v953 = vmul.f32 %v952, %v951
  %v954 = vmul.f32 %v953, %v952
  %v955 = vmul.f32 0.5, %v954
  %v956 = vsub.f32 1.5, %v955
  %v957 = vmul.f32 %v952, %v956
  %vm958 = vweird.f32 %v951
  %vm959 = vweird.f32 %v952
  %vm960 = vmor %vm958, %vm959
  %v961 = vsel %vm960, %v952, %v957
  %v962 = vmul.f32 %v950, %v961
  %963 = vrot.lane.b32.xlu0 %v816, 80
  %v964 = vpop.permute.xlu0 %963
  %v966 = vsel %vm878, %v964, 0.0
  %967 = vadd.xlane.f32.xlu0 %v966
  %v968 = vpop.xlane.xlu0 %967
  %969 = vrot.lane.b32.xlu0 %v882, 80
  %v970 = vpop.permute.xlu0 %969
  %v972 = vsel %vm878, %v970, 0.0
  %973 = vadd.xlane.f32.xlu0 %v972
  %v974 = vpop.xlane.xlu0 %973
  %v975 = vmul.f32 %v968, 0.0625
  %v976 = vmul.f32 %v974, 0.0625
  %v977 = vmul.f32 %v975, %v975
  %v978 = vsub.f32 %v976, %v977
  %v979 = vsub.f32 %v816, %v975
  %v980 = vadd.f32 %v978, 1e-05
  %v981 = vrsqrt.pop %v980
  %v982 = vmul.f32 %v981, %v980
  %v983 = vmul.f32 %v982, %v981
  %v984 = vmul.f32 0.5, %v983
  %v985 = vsub.f32 1.5, %v984
  %v986 = vmul.f32 %v981, %v985
  %vm987 = vweird.f32 %v980
  %vm988 = vweird.f32 %v981
  %vm989 = vmor %vm987, %vm988
  %v990 = vsel %vm989, %v981, %v986
  %v991 = vmul.f32 %v979, %v990
  %992 = vrot.lane.b32.xlu0 %v816, 64
  %v993 = vpop.permute.xlu0 %992
  %v995 = vsel %vm878, %v993, 0.0
  %996 = vadd.xlane.f32.xlu0 %v995
  %v997 = vpop.xlane.xlu0 %996
  %998 = vrot.lane.b32.xlu0 %v882, 64
  %v999 = vpop.permute.xlu0 %998
  %v1001 = vsel %vm878, %v999, 0.0
  %1002 = vadd.xlane.f32.xlu0 %v1001
  %v1003 = vpop.xlane.xlu0 %1002
  %v1004 = vmul.f32 %v997, 0.0625
  %v1005 = vmul.f32 %v1003, 0.0625
  %v1006 = vmul.f32 %v1004, %v1004
  %v1007 = vsub.f32 %v1005, %v1006
  %v1008 = vsub.f32 %v816, %v1004
  %v1009 = vadd.f32 %v1007, 1e-05
  %v1010 = vrsqrt.pop %v1009
  %v1011 = vmul.f32 %v1010, %v1009
  %v1012 = vmul.f32 %v1011, %v1010
  %v1013 = vmul.f32 0.5, %v1012
  %v1014 = vsub.f32 1.5, %v1013
  %v1015 = vmul.f32 %v1010, %v1014
  %vm1016 = vweird.f32 %v1009
  %vm1017 = vweird.f32 %v1010
  %vm1018 = vmor %vm1016, %vm1017
  %v1019 = vsel %vm1018, %v1010, %v1015
  %v1020 = vmul.f32 %v1008, %v1019
  %1021 = vrot.lane.b32.xlu0 %v816, 48
  %v1022 = vpop.permute.xlu0 %1021
  %v1024 = vsel %vm878, %v1022, 0.0
  %1025 = vadd.xlane.f32.xlu0 %v1024
  %v1026 = vpop.xlane.xlu0 %1025
  %1027 = vrot.lane.b32.xlu0 %v882, 48
  %v1028 = vpop.permute.xlu0 %1027
  %v1030 = vsel %vm878, %v1028, 0.0
  %1031 = vadd.xlane.f32.xlu0 %v1030
  %v1032 = vpop.xlane.xlu0 %1031
  %v1033 = vmul.f32 %v1026, 0.0625
  %v1034 = vmul.f32 %v1032, 0.0625
  %v1035 = vmul.f32 %v1033, %v1033
  %v1036 = vsub.f32 %v1034, %v1035
  %v1037 = vsub.f32 %v816, %v1033
  %v1038 = vadd.f32 %v1036, 1e-05
  %v1039 = vrsqrt.pop %v1038
  %v1040 = vmul.f32 %v1039, %v1038
  %v1041 = vmul.f32 %v1040, %v1039
  %v1042 = vmul.f32 0.5, %v1041
  %v1043 = vsub.f32 1.5, %v1042
  %v1044 = vmul.f32 %v1039, %v1043
  %vm1045 = vweird.f32 %v1038
  %vm1046 = vweird.f32 %v1039
  %vm1047 = vmor %vm1045, %vm1046
  %v1048 = vsel %vm1047, %v1039, %v1044
  %v1049 = vmul.f32 %v1037, %v1048
  %1050 = vrot.lane.b32.xlu0 %v816, 32
  %v1051 = vpop.permute.xlu0 %1050
  %v1053 = vsel %vm878, %v1051, 0.0
  %1054 = vadd.xlane.f32.xlu0 %v1053
  %v1055 = vpop.xlane.xlu0 %1054
  %1056 = vrot.lane.b32.xlu0 %v882, 32
  %v1057 = vpop.permute.xlu0 %1056
  %v1059 = vsel %vm878, %v1057, 0.0
  %1060 = vadd.xlane.f32.xlu0 %v1059
  %v1061 = vpop.xlane.xlu0 %1060
  %v1062 = vmul.f32 %v1055, 0.0625
  %v1063 = vmul.f32 %v1061, 0.0625
  %v1064 = vmul.f32 %v1062, %v1062
  %v1065 = vsub.f32 %v1063, %v1064
  %v1066 = vsub.f32 %v816, %v1062
  %v1067 = vadd.f32 %v1065, 1e-05
  %v1068 = vrsqrt.pop %v1067
  %v1069 = vmul.f32 %v1068, %v1067
  %v1070 = vmul.f32 %v1069, %v1068
  %v1071 = vmul.f32 0.5, %v1070
  %v1072 = vsub.f32 1.5, %v1071
  %v1073 = vmul.f32 %v1068, %v1072
  %vm1074 = vweird.f32 %v1067
  %vm1075 = vweird.f32 %v1068
  %vm1076 = vmor %vm1074, %vm1075
  %v1077 = vsel %vm1076, %v1068, %v1073
  %v1078 = vmul.f32 %v1066, %v1077
  %1079 = vrot.lane.b32.xlu0 %v816, 16
  %v1080 = vpop.permute.xlu0 %1079
  %v1082 = vsel %vm878, %v1080, 0.0
  %1083 = vadd.xlane.f32.xlu0 %v1082
  %v1084 = vpop.xlane.xlu0 %1083
  %1085 = vrot.lane.b32.xlu0 %v882, 16
  %v1086 = vpop.permute.xlu0 %1085
  %v1088 = vsel %vm878, %v1086, 0.0
  %1089 = vadd.xlane.f32.xlu0 %v1088
  %v1090 = vpop.xlane.xlu0 %1089
  %v1091 = vmul.f32 %v1084, 0.0625
  %v1092 = vmul.f32 %v1090, 0.0625
  %v1093 = vmul.f32 %v1091, %v1091
  %v1094 = vsub.f32 %v1092, %v1093
  %v1095 = vsub.f32 %v816, %v1091
  %v1096 = vadd.f32 %v1094, 1e-05
  %v1097 = vrsqrt.pop %v1096
  %v1098 = vmul.f32 %v1097, %v1096
  %v1099 = vmul.f32 %v1098, %v1097
  %v1100 = vmul.f32 0.5, %v1099
  %v1101 = vsub.f32 1.5, %v1100
  %v1102 = vmul.f32 %v1097, %v1101
  %vm1103 = vweird.f32 %v1096
  %vm1104 = vweird.f32 %v1097
  %vm1105 = vmor %vm1103, %vm1104
  %v1106 = vsel %vm1105, %v1097, %v1102
  %v1107 = vmul.f32 %v1095, %v1106
  %v1108 = vsel %vm878, %v876, 0.0
  %1109 = vadd.xlane.f32.xlu0 %v1108
  %v1110 = vpop.xlane.xlu0 %1109
  %v1111 = vmul.f32 %v876, %v876
  %v1112 = vsel %vm878, %v1111, 0.0
  %1113 = vadd.xlane.f32.xlu0 %v1112
  %v1114 = vpop.xlane.xlu0 %1113
  %v1115 = vmul.f32 %v1110, 0.0625
  %v1116 = vmul.f32 %v1114, 0.0625
  %v1117 = vmul.f32 %v1115, %v1115
  %v1118 = vsub.f32 %v1116, %v1117
  %v1119 = vsub.f32 %v876, %v1115
  %v1120 = vadd.f32 %v1118, 1e-05
  %v1121 = vrsqrt.pop %v1120
  %v1122 = vmul.f32 %v1121, %v1120
  %v1123 = vmul.f32 %v1122, %v1121
  %v1124 = vmul.f32 0.5, %v1123
  %v1125 = vsub.f32 1.5, %v1124
  %v1126 = vmul.f32 %v1121, %v1125
  %vm1127 = vweird.f32 %v1120
  %vm1128 = vweird.f32 %v1121
  %vm1129 = vmor %vm1127, %vm1128
  %v1130 = vsel %vm1129, %v1121, %v1126
  %v1131 = vmul.f32 %v1119, %v1130
  %v1132 = vsel %vm878, %v902, %v933
  %v1133 = vsel %vm101, %v1132, %v962
  %vm1134 = vcmask 392192
  %v1135 = vsel %vm1134, %v1133, %v991
  %v1136 = vsel %vm254, %v1135, %v1020
  %vm1137 = vcmask 654336
  %v1138 = vsel %vm1137, %v1136, %v1049
  %v1139 = vsel %vm647, %v1138, %v1078
  %vm1140 = vcmask 916480
  %v1141 = vsel %vm1140, %v1139, %v1107
  %v1142 = vld [vmem:[%s18] sm:$0x3]
  %v1144 = vperm.slane %v1142, 0
  %v1145 = vperm.slane %v1142, 1
  %v1148 = vmul.f32 %v1141, %v1144
  %v1149 = vmul.f32 %v1131, %v1145
  %v1150 = vld [vmem:[%s19] sm:$0x3]
  %v1152 = vperm.slane %v1150, 0
  %v1153 = vperm.slane %v1150, 1
  %v1156 = vadd.f32 %v1148, %v1152
  %v1157 = vadd.f32 %v1149, %v1153
  %v1158 = vmax.f32 %v1156, 0.0
  %v1159 = vmax.f32 %v1157, 0.0
  %v1160 = vld [vmem:[%s20] sm:$0xff]
  %v1161 = vld [vmem:[%s20 + $0x8] sm:$0xff]
  %v1162 = vld [vmem:[%s20 + $0x10] sm:$0xff]
  %v1163 = vld [vmem:[%s20 + $0x18] sm:$0xff]
  %v1164 = vld [vmem:[%s21] sm:$0x1]
  %v1166 = vperm.slane %v1164, 0
  %1168 = vmatpush.msra.mxu0 0.0
  %1169 = vmatpush.msra.mxu0 0.0
  %1170 = vmatpush.msra.mxu0 0.0
  %1171 = vmatpush.msra.mxu0 0.0
  %1172 = vmatpush.msra.mxu0 0.0
  %1173 = vmatpush.msra.mxu0 0.0
  %1174 = vmatpush.msra.mxu0 0.0
  %1175 = vmatpush.msra.mxu0 0.0
  %1176 = vmatpush.msra.mxu0 0.0
  %1177 = vmatpush.msra.mxu0 0.0
  %1178 = vmatpush.msra.mxu0 0.0
  %1179 = vmatpush.msra.mxu0 0.0
  %1180 = vmatpush.msra.mxu0 %v1163
  %1181 = vmatpush.msra.mxu0 %v1162
  %1182 = vmatpush.msra.mxu0 %v1161
  %1183 = vmatpush.msra.mxu0 %v1160
  %1184 = vmatmul.f32.gmra.mxu0 %v333
  %v1185 = vpop.f32.mrf.mxu0
  %v1186 = vadd.f32 %v1166, %v1185
  %1187 = vdwg.mxu0
  %vm1188 = vcmask 31744
  %v1189 = vsel %vm1188, %v1186, -inf
  %1190 = vmax.xlane.f32.xlu0 %v1189
  %v1191 = vpop.xlane.xlu0 %1190
  %v1192 = vsub.f32 %v1186, %v1191
  %v1193 = vmul.f32 %v1192, 1.442695
  %v1194 = vpow.pop %v1193
  %v1195 = vsel %vm1188, %v1194, 0.0
  %1196 = vadd.xlane.f32.xlu0 %v1195
  %v1197 = vpop.xlane.xlu0 %1196
  %v1198 = vrcp.pop %v1197
  %v1199 = vmul.f32 %v1197, %v1198
  %v1200 = vsub.f32 1.0, %v1199
  %v1201 = vmul.f32 %v1198, %v1200
  %v1202 = vadd.f32 %v1198, %v1201
  %vm1203 = vweird.f32 %v1197
  %vm1204 = vweird.f32 %v1198
  %vm1205 = vmor %vm1203, %vm1204
  %v1206 = vsel %vm1205, %v1198, %v1202
  %v1207 = vand.u32 2147483647, %v1197
  %vm1208 = vcmp.eq.f32.partialorder %v1207, 8.507059e+37
  %v1209 = vand.u32 %v1197, 2147483648
  %v1210 = vor.u32 1.1754944e-38, %v1209
  %v1211 = vsel %vm1208, %v1210, %v1206
  %v1212 = vmul.f32 %v1194, %v1211
  %1214 = vset.pattern.permute.xlu0 0
  %1215 = vperm.xlu0 %1214, %v1212
  %v1216 = vpop.permute.xlu0 %1215
  %v1218 = vmul.f32 %v1216, %v1158
  %v1219 = vadd.f32 %v1218, 0.0
  %1220 = vset.pattern.permute.xlu0 1
  %1221 = vperm.xlu0 %1220, %v1212
  %v1222 = vpop.permute.xlu0 %1221
  %v1224 = vmul.f32 %v1222, %v1158
  %1226 = vrot.lane.b32.xlu0 %v1224, 112
  %v1227 = vpop.permute.xlu0 %1226
  %v1229 = vadd.f32 %v1219, %v1227
  %1230 = vset.pattern.permute.xlu0 2
  %1231 = vperm.xlu0 %1230, %v1212
  %v1232 = vpop.permute.xlu0 %1231
  %v1234 = vmul.f32 %v1232, %v1158
  %1236 = vrot.lane.b32.xlu0 %v1234, 96
  %v1237 = vpop.permute.xlu0 %1236
  %v1239 = vadd.f32 %v1229, %v1237
  %1240 = vset.pattern.permute.xlu0 3
  %1241 = vperm.xlu0 %1240, %v1212
  %v1242 = vpop.permute.xlu0 %1241
  %v1244 = vmul.f32 %v1242, %v1158
  %1246 = vrot.lane.b32.xlu0 %v1244, 80
  %v1247 = vpop.permute.xlu0 %1246
  %v1249 = vadd.f32 %v1239, %v1247
  %v1250 = vld [vmem:[%s22] sm:$0xff]
  %v1251 = vld [vmem:[%s22 + $0x8] sm:$0xff]
  %v1252 = vld [vmem:[%s23] sm:$0xff]
  %v1253 = vld [vmem:[%s23 + $0x8] sm:$0xff]
  %v1254 = vld [vmem:[%s23 + $0x10] sm:$0xff]
  %v1255 = vld [vmem:[%s23 + $0x18] sm:$0xff]
  %v1256 = vld [vmem:[%s23 + $0x20] sm:$0xff]
  %v1257 = vld [vmem:[%s23 + $0x28] sm:$0xff]
  %1259 = vrot.lane.b32.xlu0 %v1158, 64
  %v1260 = vpop.permute.xlu0 %1259
  %v1261 = vsel %vm1134, %v1260, 0
  %1263 = vmatpush.msra.mxu0 0.0
  %1264 = vmatpush.msra.mxu0 0.0
  %1265 = vmatpush.msra.mxu0 0.0
  %1266 = vmatpush.msra.mxu0 0.0
  %1267 = vmatpush.msra.mxu0 0.0
  %1268 = vmatpush.msra.mxu0 0.0
  %1269 = vmatpush.msra.mxu0 0.0
  %1270 = vmatpush.msra.mxu0 0.0
  %1271 = vmatpush.msra.mxu0 0.0
  %1272 = vmatpush.msra.mxu0 0.0
  %1273 = vmatpush.msra.mxu0 %v1257
  %1274 = vmatpush.msra.mxu0 %v1256
  %1275 = vmatpush.msra.mxu0 %v1255
  %1276 = vmatpush.msra.mxu0 %v1254
  %1277 = vmatpush.msra.mxu0 %v1253
  %1278 = vmatpush.msra.mxu0 %v1252
  %1279 = vmatmul.f32.gmra.mxu0 %v1261
  %v1280 = vpop.f32.mrf.mxu0
  %v1281 = vadd.f32 0.0, %v1280
  %1282 = vdwg.mxu0
  %v1284 = vsel %vm878, %v1249, 0
  %1286 = vmatpush.msra.mxu0 0.0
  %1287 = vmatpush.msra.mxu0 0.0
  %1288 = vmatpush.msra.mxu0 0.0
  %1289 = vmatpush.msra.mxu0 0.0
  %1290 = vmatpush.msra.mxu0 0.0
  %1291 = vmatpush.msra.mxu0 0.0
  %1292 = vmatpush.msra.mxu0 0.0
  %1293 = vmatpush.msra.mxu0 0.0
  %1294 = vmatpush.msra.mxu0 0.0
  %1295 = vmatpush.msra.mxu0 0.0
  %1296 = vmatpush.msra.mxu0 0.0
  %1297 = vmatpush.msra.mxu0 0.0
  %1298 = vmatpush.msra.mxu0 0.0
  %1299 = vmatpush.msra.mxu0 0.0
  %1300 = vmatpush.msra.mxu0 %v1251
  %1301 = vmatpush.msra.mxu0 %v1250
  %1302 = vmatmul.f32.gmra.mxu0 %v1284
  %v1303 = vpop.f32.mrf.mxu0
  %v1304 = vadd.f32 %v1281, %v1303
  %1305 = vdwg.mxu0
  %v1306 = vld [vmem:[%s24] sm:$0xff]
  %v1307 = vld [vmem:[%s24 + $0x8] sm:$0xff]
  %v1308 = vld [vmem:[%s24 + $0x10] sm:$0xff]
  %v1309 = vld [vmem:[%s24 + $0x18] sm:$0xff]
  %1311 = vrot.lane.b32.xlu0 %v1158, 16
  %v1312 = vpop.permute.xlu0 %1311
  %1313 = vrot.lane.b32.xlu0 %v1159, 16
  %v1314 = vpop.permute.xlu0 %1313
  %v1315 = vsel %vm878, %v1312, %v1314
  %v1316 = vsel %vm101, %v1315, 0
  %1318 = vmatpush.msra.mxu0 0.0
  %1319 = vmatpush.msra.mxu0 0.0
  %1320 = vmatpush.msra.mxu0 0.0
  %1321 = vmatpush.msra.mxu0 0.0
  %1322 = vmatpush.msra.mxu0 0.0
  %1323 = vmatpush.msra.mxu0 0.0
  %1324 = vmatpush.msra.mxu0 0.0
  %1325 = vmatpush.msra.mxu0 0.0
  %1326 = vmatpush.msra.mxu0 0.0
  %1327 = vmatpush.msra.mxu0 0.0
  %1328 = vmatpush.msra.mxu0 0.0
  %1329 = vmatpush.msra.mxu0 0.0
  %1330 = vmatpush.msra.mxu0 %v1309
  %1331 = vmatpush.msra.mxu0 %v1308
  %1332 = vmatpush.msra.mxu0 %v1307
  %1333 = vmatpush.msra.mxu0 %v1306
  %1334 = vmatmul.f32.gmra.mxu0 %v1316
  %v1335 = vpop.f32.mrf.mxu0
  %v1336 = vadd.f32 0.0, %v1335
  %1337 = vdwg.mxu0
  %v1338 = vadd.f32 %v1304, %v1336
  %v1339 = vld [vmem:[%s25] sm:$0x1]
  %v1341 = vperm.slane %v1339, 0
  %v1343 = vadd.f32 %v1338, %v1341
  %v1344 = vmax.f32 %v1343, 0.0
  %v1345 = vld [vmem:[%s26] sm:$0xff]
  %v1346 = vld [vmem:[%s26 + $0x8] sm:$0xff]
  %v1347 = vld [vmem:[%s26 + $0x10] sm:$0xff]
  %v1348 = vld [vmem:[%s26 + $0x18] sm:$0xff]
  %v1349 = vld [vmem:[%s26 + $0x20] sm:$0xff]
  %v1350 = vld [vmem:[%s26 + $0x28] sm:$0xff]
  %v1351 = vld [vmem:[%s26 + $0x30] sm:$0xff]
  %v1352 = vld [vmem:[%s26 + $0x38] sm:$0xff]
  %v1353 = vld [vmem:[%s26 + $0x40] sm:$0xff]
  %v1354 = vld [vmem:[%s26 + $0x48] sm:$0xff]
  %v1355 = vld [vmem:[%s26 + $0x50] sm:$0xff]
  %v1356 = vld [vmem:[%s26 + $0x58] sm:$0xff]
  %v1357 = vld [vmem:[%s27] sm:$0x1]
  %v1359 = vperm.slane %v1357, 0
  %v1362 = vsel %vm647, %v1344, 0
  %1364 = vmatpush.msra.mxu0 0.0
  %1365 = vmatpush.msra.mxu0 0.0
  %1366 = vmatpush.msra.mxu0 0.0
  %1367 = vmatpush.msra.mxu0 0.0
  %1368 = vmatpush.msra.mxu0 %v1356
  %1369 = vmatpush.msra.mxu0 %v1355
  %1370 = vmatpush.msra.mxu0 %v1354
  %1371 = vmatpush.msra.mxu0 %v1353
  %1372 = vmatpush.msra.mxu0 %v1352
  %1373 = vmatpush.msra.mxu0 %v1351
  %1374 = vmatpush.msra.mxu0 %v1350
  %1375 = vmatpush.msra.mxu0 %v1349
  %1376 = vmatpush.msra.mxu0 %v1348
  %1377 = vmatpush.msra.mxu0 %v1347
  %1378 = vmatpush.msra.mxu0 %v1346
  %1379 = vmatpush.msra.mxu0 %v1345
  %1380 = vmatmul.f32.gmra.mxu0 %v1362
  %v1381 = vpop.f32.mrf.mxu0
  %v1382 = vadd.f32 %v1359, %v1381
  %1383 = vdwg.mxu0
  %v1384 = vxor.u32 %v1382, 2147483648
  %v1385 = vmul.f32 %v1384, 1.442695
  %v1386 = vpow.pop %v1385
  %v1387 = vadd.f32 %v1386, 1.0
  %v1388 = vrcp.pop %v1387
  %v1389 = vmul.f32 %v1387, %v1388
  %v1390 = vsub.f32 1.0, %v1389
  %v1391 = vmul.f32 %v1388, %v1390
  %v1392 = vadd.f32 %v1388, %v1391
  %vm1393 = vweird.f32 %v1387
  %vm1394 = vweird.f32 %v1388
  %vm1395 = vmor %vm1393, %vm1394
  %v1396 = vsel %vm1395, %v1388, %v1392
  %v1397 = vand.u32 2147483647, %v1387
  %vm1398 = vcmp.eq.f32.partialorder %v1397, 8.507059e+37
  %v1399 = vand.u32 %v1387, 2147483648
  %v1400 = vor.u32 1.1754944e-38, %v1399
  %v1401 = vsel %vm1398, %v1400, %v1396
  %v1402 = vmul.f32 1.0, %v1401
  %1403 = vrot.lane.b32.xlu0 %v90, 3
  %v1404 = vpop.permute.xlu0 %1403
  %vm1406 = vcmask 23552
  %v1407 = vsel %vm1406, %v90, %v1404
  %v1408 = vmul.f32 %v1402, %v1407
  %v1409 = vsel %vm1406, %v1408, 0.0
  %1410 = vadd.xlane.f32.xlu0 %v1409
  %v1411 = vpop.xlane.xlu0 %1410
  %1413 = vrot.lane.b32.xlu0 %v1408, 125
  %v1414 = vpop.permute.xlu0 %1413
  %v1416 = vsel %vm1406, %v1414, 0.0
  %1417 = vadd.xlane.f32.xlu0 %v1416
  %v1418 = vpop.xlane.xlu0 %1417
  %vm1419 = vcmask 7168
  %v1420 = vsel %vm1419, %v1411, %v1418
  %vm1421 = vcmask 15360
  %1422 = vst.msk [vmem:[%s28] sm:$0xff] %vm1421, %v1420
  // Predicated region
  $region114: #{forward.1} parent=0 // pred_check
    _
  $region115: #{forward.1} parent=0 // pred_check_branch
    %1424 = sbr.rel (0) target = $region117
  $region116: #{forward.1} parent=0 // pred_region
    _
  $region117: #{forward.1} parent=0 // pred_fallthru
    _
  // Predicated region
  $region118: #{forward.1} parent=0 // pred_check
    _
  $region119: #{forward.1} parent=0 // pred_check_branch
    %1426 = sbr.rel (0) target = $region121
  $region120: #{forward.1} parent=0 // pred_region
    _
  $region121: #{forward.1} parent=0 // pred_fallthru
    _

</llo_original>
